<compile_context>
chip_gen: v6e
topology: v6e:2x2x1
jax: 0.10.0
libtpu: 0.0.40
codegen_flags: <defaults>
</compile_context>

<pallas_src>
import math

import jax
import jax.numpy as jnp
from jax import lax
from jax.experimental import pallas as pl
from jax.experimental.pallas import tpu as pltpu


# -----------------------------------------------------------------------------
# Kernel 1: GRU recurrence -- single invocation, in-kernel time loop.
# -----------------------------------------------------------------------------
def gru_recurrence_kernel(x_ref, wi_ref, wh_ref, bi_ref, bhn_ref, hs_ref):
    """x:(T,B,I) wi:(I,3H) wh:(H,3H) bi:(1,3H) bhn:(1,H) -> hs:(T,B,H)."""
    T, B, _ = x_ref.shape
    H = wh_ref.shape[0]

    def step(t, h):
        x = x_ref[t]                                                    # (B, I)
        # Fused gate matmuls: one MXU push for the input path, one for hidden.
        gi = jnp.dot(x, wi_ref[...], preferred_element_type=jnp.float32) + bi_ref[...]
        gh = jnp.dot(h, wh_ref[...], preferred_element_type=jnp.float32)
        # PyTorch gate order: r, z, n  (static lane slices of the (B, 3H) slab).
        r = jax.nn.sigmoid(gi[:, 0 * H:1 * H] + gh[:, 0 * H:1 * H])
        z = jax.nn.sigmoid(gi[:, 1 * H:2 * H] + gh[:, 1 * H:2 * H])
        n = jnp.tanh(gi[:, 2 * H:3 * H] + r * (gh[:, 2 * H:3 * H] + bhn_ref[...]))
        h_new = (1.0 - z) * n + z * h
        hs_ref[t] = h_new
        return h_new

    # hidden = zeros(1, batch, H) in the PyTorch forward.
    lax.fori_loop(0, T, step, jnp.zeros((B, H), jnp.float32), unroll=True)


# -----------------------------------------------------------------------------
# Kernel 2: time-independent FC(256) + FC2 projection over the (T*B, H) slab.
# -----------------------------------------------------------------------------
def fc_projection_kernel(hs_ref, w1_ref, b1_ref, w2_ref, b2_ref, out_ref):
    """hs:(T*B,H) w1:(H,FC) b1:(1,FC) w2:(FC,OP) b2:(1,OP) -> out:(T*B,OP)."""
    fc1 = jnp.dot(hs_ref[...], w1_ref[...], preferred_element_type=jnp.float32) + b1_ref[...]
    fc2 = jnp.dot(fc1, w2_ref[...], preferred_element_type=jnp.float32) + b2_ref[...]
    out_ref[...] = fc2.astype(out_ref.dtype)


def _round_up(n, m):
    return ((n + m - 1) // m) * m


@jax.jit
def gru_forward(X, Wi, Wh, bi, bh, W1, b1, W2, b2):
    """Forward of GRU(n_inputs, n_neurons) -> Linear(n_neurons, 256) -> Linear(256, n_out).

    Parameter layout (see init_params):
      Wi: (3, I, H)  transposed weight_ih_l0 split per gate (r, z, n)
      Wh: (3, H, H)  transposed weight_hh_l0 split per gate
      bi, bh: (3, 1, H)
      W1: (H, 256), b1: (1, 256), W2: (256, O), b2: (1, O)
    """
    T, B, I = X.shape
    H = Wh.shape[-1]
    FC = W1.shape[-1]
    O = W2.shape[-1]
    OP = _round_up(O, 128)          # lane-dense padded output width

    # ---- host-side weight fusion: concat gates, pre-add r/z biases -----------
    Wi_cat = jnp.concatenate([Wi[0], Wi[1], Wi[2]], axis=-1)                   # (I, 3H)
    Wh_cat = jnp.concatenate([Wh[0], Wh[1], Wh[2]], axis=-1)                   # (H, 3H)
    bi_cat = jnp.concatenate([bi[0] + bh[0], bi[1] + bh[1], bi[2]], axis=-1)   # (1, 3H)
    bhn = bh[2]                                                                # (1, H)

    vmem_spec = pl.BlockSpec(memory_space=pltpu.MemorySpace.VMEM)

    rec_cost = pl.CostEstimate(
        flops=T * (2 * B * I * 3 * H + 2 * B * H * 3 * H + 12 * B * H),
        transcendentals=T * B * 3 * H,
        bytes_accessed=4 * (T * B * I + I * 3 * H + H * 3 * H + 4 * H + T * B * H),
    )
    hs = pl.pallas_call(
        gru_recurrence_kernel,
        out_shape=jax.ShapeDtypeStruct((T, B, H), jnp.float32),
        in_specs=[vmem_spec] * 5,
        out_specs=vmem_spec,
        cost_estimate=rec_cost,
    )(X, Wi_cat, Wh_cat, bi_cat, bhn)

    # ---- FC1/FC2 hoisted out of the recurrence, lane-dense output ------------
    W2p = jnp.pad(W2, ((0, 0), (0, OP - O)))
    b2p = jnp.pad(b2, ((0, 0), (0, OP - O)))
    hs_flat = hs.reshape(T * B, H)

    fc_cost = pl.CostEstimate(
        flops=2 * T * B * H * FC + 2 * T * B * FC * OP,
        transcendentals=0,
        bytes_accessed=4 * (T * B * H + H * FC + FC + FC * OP + OP + T * B * OP),
    )
    out_padded = pl.pallas_call(
        fc_projection_kernel,
        out_shape=jax.ShapeDtypeStruct((T * B, OP), jnp.float32),
        in_specs=[vmem_spec] * 5,
        out_specs=vmem_spec,
        cost_estimate=fc_cost,
    )(hs_flat, W1, b1, W2p, b2p)

    return out_padded[:, :O].reshape(T, B, O)


# -----------------------------------------------------------------------------
# Pure-JAX reference (same math as torch.nn.GRU + Linear + Linear).
# -----------------------------------------------------------------------------
def gru_forward_ref(X, Wi, Wh, bi, bh, W1, b1, W2, b2):
    T, B, I = X.shape
    H = Wh.shape[-1]
    h0 = jnp.zeros((B, H), jnp.float32)

    def step(h, x):
        gi = jnp.einsum('bi,gih->gbh', x, Wi) + bi
        gh = jnp.einsum('bh,ghk->gbk', h, Wh) + bh
        r = jax.nn.sigmoid(gi[0] + gh[0])
        z = jax.nn.sigmoid(gi[1] + gh[1])
        n = jnp.tanh(gi[2] + r * gh[2])
        h_new = (1.0 - z) * n + z * h
        return h_new, h_new

    _, hs = lax.scan(step, h0, X)                 # (T, B, H)
    out = hs @ W1 + b1                            # (T, B, 256)
    out = out @ W2 + b2                           # (T, B, n_out)
    return out


def init_params(key, n_inputs, n_neurons, n_fc, n_out):
    """Deterministic init matching the shapes of nn.GRU / nn.Linear params."""
    ks = jax.random.split(key, 8)
    kh = 1.0 / math.sqrt(n_neurons)
    kfc = 1.0 / math.sqrt(n_fc)

    def u(k, shape, bound):
        return jax.random.uniform(k, shape, jnp.float32, -bound, bound)

    Wi = u(ks[0], (3, n_inputs, n_neurons), kh)    # transposed weight_ih_l0 per gate
    Wh = u(ks[1], (3, n_neurons, n_neurons), kh)   # transposed weight_hh_l0 per gate
    bi = u(ks[2], (3, 1, n_neurons), kh)           # bias_ih_l0 per gate
    bh = u(ks[3], (3, 1, n_neurons), kh)           # bias_hh_l0 per gate
    W1 = u(ks[4], (n_neurons, n_fc), kh)           # FC weight (transposed)
    b1 = u(ks[5], (1, n_fc), kh)
    W2 = u(ks[6], (n_fc, n_out), kfc)              # FC2 weight (transposed)
    b2 = u(ks[7], (1, n_out), kfc)
    return Wi, Wh, bi, bh, W1, b1, W2, b2


if __name__ == "__main__":
    # Small shapes consistent with the module's forward:
    # X: (seq_len, batch, n_inputs); hidden size == n_neurons (zeros init).
    seq_len, batch, n_inputs = 8, 4, 16
    n_neurons, n_fc, n_real_outputs = 32, 256, 8

    key = jax.random.PRNGKey(0)
    kx, kp = jax.random.split(key)
    X = jax.random.normal(kx, (seq_len, batch, n_inputs), jnp.float32)
    params = init_params(kp, n_inputs, n_neurons, n_fc, n_real_outputs)

    out = gru_forward(X, *params)
    out = jax.block_until_ready(out)

    ref = gru_forward_ref(X, *params)
    assert out.shape == (seq_len, batch, n_real_outputs)
    assert jnp.allclose(out, ref, atol=1e-4, rtol=1e-4), \
        f"max abs err {jnp.max(jnp.abs(out - ref))}"

    print("KERNEL_OK")
</pallas_src>

<mosaic_0001>
module attributes {stable_mosaic.version = 11 : i64} {
  func.func @gru_recurrence_kernel(%arg0: memref<8x4x16xf32, #tpu.memory_space<vmem>>, %arg1: memref<16x96xf32, #tpu.memory_space<vmem>>, %arg2: memref<32x96xf32, #tpu.memory_space<vmem>>, %arg3: memref<1x96xf32, #tpu.memory_space<vmem>>, %arg4: memref<1x32xf32, #tpu.memory_space<vmem>>, %arg5: memref<8x4x32xf32, #tpu.memory_space<vmem>>) attributes {dimension_semantics = [], scalar_prefetch = 0 : i64, scratch_operands = 0 : i64, tpu.core_type = #tpu.core_type<tc>} {
    %cst = arith.constant 0.000000e+00 : f32
    %0 = vector.broadcast %cst : f32 to vector<4x32xf32>
    %c0_i32 = arith.constant 0 : i32
    %1 = arith.index_cast %c0_i32 : i32 to index
    %c0 = arith.constant 0 : index
    %c0_0 = arith.constant 0 : index
    %2 = vector.load %arg0[%1, %c0, %c0_0] : memref<8x4x16xf32, #tpu.memory_space<vmem>>, vector<1x4x16xf32>
    %3 = vector.shape_cast %2 : vector<1x4x16xf32> to vector<4x16xf32>
    %c0_1 = arith.constant 0 : index
    %c0_2 = arith.constant 0 : index
    %4 = vector.load %arg1[%c0_1, %c0_2] : memref<16x96xf32, #tpu.memory_space<vmem>>, vector<16x96xf32>
    %cst_3 = arith.constant dense<0.000000e+00> : vector<4x96xf32>
    %5 = tpu.matmul %3, %4, %cst_3 {dimension_numbers = #tpu.dot_dimension_numbers<[1], [0], [0], [1], [0, 0, 1, 1], [], []>} : vector<4x16xf32>, vector<16x96xf32>, vector<4x96xf32> -> vector<4x96xf32>
    %c0_4 = arith.constant 0 : index
    %c0_5 = arith.constant 0 : index
    %6 = vector.load %arg3[%c0_4, %c0_5] : memref<1x96xf32, #tpu.memory_space<vmem>>, vector<1x96xf32>
    %7 = vector.broadcast %6 : vector<1x96xf32> to vector<4x96xf32>
    %8 = arith.addf %5, %7 : vector<4x96xf32>
    %c0_6 = arith.constant 0 : index
    %c0_7 = arith.constant 0 : index
    %9 = vector.load %arg2[%c0_6, %c0_7] : memref<32x96xf32, #tpu.memory_space<vmem>>, vector<32x96xf32>
    %cst_8 = arith.constant dense<0.000000e+00> : vector<4x96xf32>
    %10 = tpu.matmul %0, %9, %cst_8 {dimension_numbers = #tpu.dot_dimension_numbers<[1], [0], [0], [1], [0, 0, 1, 1], [], []>} : vector<4x32xf32>, vector<32x96xf32>, vector<4x96xf32> -> vector<4x96xf32>
    %11 = vector.extract_strided_slice %8 {offsets = [0, 0], sizes = [4, 32], strides = [1, 1]} : vector<4x96xf32> to vector<4x32xf32>
    %12 = vector.extract_strided_slice %10 {offsets = [0, 0], sizes = [4, 32], strides = [1, 1]} : vector<4x96xf32> to vector<4x32xf32>
    %13 = arith.addf %11, %12 : vector<4x32xf32>
    %14 = arith.negf %13 : vector<4x32xf32>
    %15 = math.exp %14 : vector<4x32xf32>
    %cst_9 = arith.constant 1.000000e+00 : f32
    %16 = vector.broadcast %cst_9 : f32 to vector<4x32xf32>
    %17 = arith.addf %16, %15 : vector<4x32xf32>
    %18 = arith.divf %16, %17 : vector<4x32xf32>
    %19 = vector.extract_strided_slice %8 {offsets = [0, 32], sizes = [4, 32], strides = [1, 1]} : vector<4x96xf32> to vector<4x32xf32>
    %20 = vector.extract_strided_slice %10 {offsets = [0, 32], sizes = [4, 32], strides = [1, 1]} : vector<4x96xf32> to vector<4x32xf32>
    %21 = arith.addf %19, %20 : vector<4x32xf32>
    %22 = arith.negf %21 : vector<4x32xf32>
    %23 = math.exp %22 : vector<4x32xf32>
    %cst_10 = arith.constant 1.000000e+00 : f32
    %24 = vector.broadcast %cst_10 : f32 to vector<4x32xf32>
    %25 = arith.addf %24, %23 : vector<4x32xf32>
    %26 = arith.divf %24, %25 : vector<4x32xf32>
    %27 = vector.extract_strided_slice %8 {offsets = [0, 64], sizes = [4, 32], strides = [1, 1]} : vector<4x96xf32> to vector<4x32xf32>
    %28 = vector.extract_strided_slice %10 {offsets = [0, 64], sizes = [4, 32], strides = [1, 1]} : vector<4x96xf32> to vector<4x32xf32>
    %c0_11 = arith.constant 0 : index
    %c0_12 = arith.constant 0 : index
    %29 = vector.load %arg4[%c0_11, %c0_12] : memref<1x32xf32, #tpu.memory_space<vmem>>, vector<1x32xf32>
    %30 = vector.broadcast %29 : vector<1x32xf32> to vector<4x32xf32>
    %31 = arith.addf %28, %30 : vector<4x32xf32>
    %32 = arith.mulf %18, %31 : vector<4x32xf32>
    %33 = arith.addf %27, %32 : vector<4x32xf32>
    %34 = math.tanh %33 : vector<4x32xf32>
    %cst_13 = arith.constant 1.000000e+00 : f32
    %35 = vector.broadcast %cst_13 : f32 to vector<4x32xf32>
    %36 = arith.subf %35, %26 : vector<4x32xf32>
    %37 = arith.mulf %36, %34 : vector<4x32xf32>
    %38 = arith.mulf %26, %0 : vector<4x32xf32>
    %39 = arith.addf %37, %38 : vector<4x32xf32>
    %40 = arith.index_cast %c0_i32 : i32 to index
    %c0_14 = arith.constant 0 : index
    %c0_15 = arith.constant 0 : index
    %41 = vector.load %arg5[%40, %c0_14, %c0_15] : memref<8x4x32xf32, #tpu.memory_space<vmem>>, vector<1x4x32xf32>
    %42 = vector.shape_cast %41 : vector<1x4x32xf32> to vector<4x32xf32>
    %43 = vector.shape_cast %39 : vector<4x32xf32> to vector<1x4x32xf32>
    tpu.vector_store %arg5[%40, %c0_14, %c0_15], %43 {strides = array<i32>} : memref<8x4x32xf32, #tpu.memory_space<vmem>>, vector<1x4x32xf32>,
    %c1_i32 = arith.constant 1 : i32
    %44 = arith.index_cast %c1_i32 : i32 to index
    %c0_16 = arith.constant 0 : index
    %c0_17 = arith.constant 0 : index
    %45 = vector.load %arg0[%44, %c0_16, %c0_17] : memref<8x4x16xf32, #tpu.memory_space<vmem>>, vector<1x4x16xf32>
    %46 = vector.shape_cast %45 : vector<1x4x16xf32> to vector<4x16xf32>
    %c0_18 = arith.constant 0 : index
    %c0_19 = arith.constant 0 : index
    %47 = vector.load %arg1[%c0_18, %c0_19] : memref<16x96xf32, #tpu.memory_space<vmem>>, vector<16x96xf32>
    %cst_20 = arith.constant dense<0.000000e+00> : vector<4x96xf32>
    %48 = tpu.matmul %46, %47, %cst_20 {dimension_numbers = #tpu.dot_dimension_numbers<[1], [0], [0], [1], [0, 0, 1, 1], [], []>} : vector<4x16xf32>, vector<16x96xf32>, vector<4x96xf32> -> vector<4x96xf32>
    %c0_21 = arith.constant 0 : index
    %c0_22 = arith.constant 0 : index
    %49 = vector.load %arg3[%c0_21, %c0_22] : memref<1x96xf32, #tpu.memory_space<vmem>>, vector<1x96xf32>
    %50 = vector.broadcast %49 : vector<1x96xf32> to vector<4x96xf32>
    %51 = arith.addf %48, %50 : vector<4x96xf32>
    %c0_23 = arith.constant 0 : index
    %c0_24 = arith.constant 0 : index
    %52 = vector.load %arg2[%c0_23, %c0_24] : memref<32x96xf32, #tpu.memory_space<vmem>>, vector<32x96xf32>
    %cst_25 = arith.constant dense<0.000000e+00> : vector<4x96xf32>
    %53 = tpu.matmul %39, %52, %cst_25 {dimension_numbers = #tpu.dot_dimension_numbers<[1], [0], [0], [1], [0, 0, 1, 1], [], []>} : vector<4x32xf32>, vector<32x96xf32>, vector<4x96xf32> -> vector<4x96xf32>
    %54 = vector.extract_strided_slice %51 {offsets = [0, 0], sizes = [4, 32], strides = [1, 1]} : vector<4x96xf32> to vector<4x32xf32>
    %55 = vector.extract_strided_slice %53 {offsets = [0, 0], sizes = [4, 32], strides = [1, 1]} : vector<4x96xf32> to vector<4x32xf32>
    %56 = arith.addf %54, %55 : vector<4x32xf32>
    %57 = arith.negf %56 : vector<4x32xf32>
    %58 = math.exp %57 : vector<4x32xf32>
    %cst_26 = arith.constant 1.000000e+00 : f32
    %59 = vector.broadcast %cst_26 : f32 to vector<4x32xf32>
    %60 = arith.addf %59, %58 : vector<4x32xf32>
    %61 = arith.divf %59, %60 : vector<4x32xf32>
    %62 = vector.extract_strided_slice %51 {offsets = [0, 32], sizes = [4, 32], strides = [1, 1]} : vector<4x96xf32> to vector<4x32xf32>
    %63 = vector.extract_strided_slice %53 {offsets = [0, 32], sizes = [4, 32], strides = [1, 1]} : vector<4x96xf32> to vector<4x32xf32>
    %64 = arith.addf %62, %63 : vector<4x32xf32>
    %65 = arith.negf %64 : vector<4x32xf32>
    %66 = math.exp %65 : vector<4x32xf32>
    %cst_27 = arith.constant 1.000000e+00 : f32
    %67 = vector.broadcast %cst_27 : f32 to vector<4x32xf32>
    %68 = arith.addf %67, %66 : vector<4x32xf32>
    %69 = arith.divf %67, %68 : vector<4x32xf32>
    %70 = vector.extract_strided_slice %51 {offsets = [0, 64], sizes = [4, 32], strides = [1, 1]} : vector<4x96xf32> to vector<4x32xf32>
    %71 = vector.extract_strided_slice %53 {offsets = [0, 64], sizes = [4, 32], strides = [1, 1]} : vector<4x96xf32> to vector<4x32xf32>
    %c0_28 = arith.constant 0 : index
    %c0_29 = arith.constant 0 : index
    %72 = vector.load %arg4[%c0_28, %c0_29] : memref<1x32xf32, #tpu.memory_space<vmem>>, vector<1x32xf32>
    %73 = vector.broadcast %72 : vector<1x32xf32> to vector<4x32xf32>
    %74 = arith.addf %71, %73 : vector<4x32xf32>
    %75 = arith.mulf %61, %74 : vector<4x32xf32>
    %76 = arith.addf %70, %75 : vector<4x32xf32>
    %77 = math.tanh %76 : vector<4x32xf32>
    %cst_30 = arith.constant 1.000000e+00 : f32
    %78 = vector.broadcast %cst_30 : f32 to vector<4x32xf32>
    %79 = arith.subf %78, %69 : vector<4x32xf32>
    %80 = arith.mulf %79, %77 : vector<4x32xf32>
    %81 = arith.mulf %69, %39 : vector<4x32xf32>
    %82 = arith.addf %80, %81 : vector<4x32xf32>
    %83 = arith.index_cast %c1_i32 : i32 to index
    %c0_31 = arith.constant 0 : index
    %c0_32 = arith.constant 0 : index
    %84 = vector.load %arg5[%83, %c0_31, %c0_32] : memref<8x4x32xf32, #tpu.memory_space<vmem>>, vector<1x4x32xf32>
    %85 = vector.shape_cast %84 : vector<1x4x32xf32> to vector<4x32xf32>
    %86 = vector.shape_cast %82 : vector<4x32xf32> to vector<1x4x32xf32>
    tpu.vector_store %arg5[%83, %c0_31, %c0_32], %86 {strides = array<i32>} : memref<8x4x32xf32, #tpu.memory_space<vmem>>, vector<1x4x32xf32>,
    %c2_i32 = arith.constant 2 : i32
    %87 = arith.index_cast %c2_i32 : i32 to index
    %c0_33 = arith.constant 0 : index
    %c0_34 = arith.constant 0 : index
    %88 = vector.load %arg0[%87, %c0_33, %c0_34] : memref<8x4x16xf32, #tpu.memory_space<vmem>>, vector<1x4x16xf32>
    %89 = vector.shape_cast %88 : vector<1x4x16xf32> to vector<4x16xf32>
    %c0_35 = arith.constant 0 : index
    %c0_36 = arith.constant 0 : index
    %90 = vector.load %arg1[%c0_35, %c0_36] : memref<16x96xf32, #tpu.memory_space<vmem>>, vector<16x96xf32>
    %cst_37 = arith.constant dense<0.000000e+00> : vector<4x96xf32>
    %91 = tpu.matmul %89, %90, %cst_37 {dimension_numbers = #tpu.dot_dimension_numbers<[1], [0], [0], [1], [0, 0, 1, 1], [], []>} : vector<4x16xf32>, vector<16x96xf32>, vector<4x96xf32> -> vector<4x96xf32>
    %c0_38 = arith.constant 0 : index
    %c0_39 = arith.constant 0 : index
    %92 = vector.load %arg3[%c0_38, %c0_39] : memref<1x96xf32, #tpu.memory_space<vmem>>, vector<1x96xf32>
    %93 = vector.broadcast %92 : vector<1x96xf32> to vector<4x96xf32>
    %94 = arith.addf %91, %93 : vector<4x96xf32>
    %c0_40 = arith.constant 0 : index
    %c0_41 = arith.constant 0 : index
    %95 = vector.load %arg2[%c0_40, %c0_41] : memref<32x96xf32, #tpu.memory_space<vmem>>, vector<32x96xf32>
    %cst_42 = arith.constant dense<0.000000e+00> : vector<4x96xf32>
    %96 = tpu.matmul %82, %95, %cst_42 {dimension_numbers = #tpu.dot_dimension_numbers<[1], [0], [0], [1], [0, 0, 1, 1], [], []>} : vector<4x32xf32>, vector<32x96xf32>, vector<4x96xf32> -> vector<4x96xf32>
    %97 = vector.extract_strided_slice %94 {offsets = [0, 0], sizes = [4, 32], strides = [1, 1]} : vector<4x96xf32> to vector<4x32xf32>
    %98 = vector.extract_strided_slice %96 {offsets = [0, 0], sizes = [4, 32], strides = [1, 1]} : vector<4x96xf32> to vector<4x32xf32>
    %99 = arith.addf %97, %98 : vector<4x32xf32>
    %100 = arith.negf %99 : vector<4x32xf32>
    %101 = math.exp %100 : vector<4x32xf32>
    %cst_43 = arith.constant 1.000000e+00 : f32
    %102 = vector.broadcast %cst_43 : f32 to vector<4x32xf32>
    %103 = arith.addf %102, %101 : vector<4x32xf32>
    %104 = arith.divf %102, %103 : vector<4x32xf32>
    %105 = vector.extract_strided_slice %94 {offsets = [0, 32], sizes = [4, 32], strides = [1, 1]} : vector<4x96xf32> to vector<4x32xf32>
    %106 = vector.extract_strided_slice %96 {offsets = [0, 32], sizes = [4, 32], strides = [1, 1]} : vector<4x96xf32> to vector<4x32xf32>
    %107 = arith.addf %105, %106 : vector<4x32xf32>
    %108 = arith.negf %107 : vector<4x32xf32>
    %109 = math.exp %108 : vector<4x32xf32>
    %cst_44 = arith.constant 1.000000e+00 : f32
    %110 = vector.broadcast %cst_44 : f32 to vector<4x32xf32>
    %111 = arith.addf %110, %109 : vector<4x32xf32>
    %112 = arith.divf %110, %111 : vector<4x32xf32>
    %113 = vector.extract_strided_slice %94 {offsets = [0, 64], sizes = [4, 32], strides = [1, 1]} : vector<4x96xf32> to vector<4x32xf32>
    %114 = vector.extract_strided_slice %96 {offsets = [0, 64], sizes = [4, 32], strides = [1, 1]} : vector<4x96xf32> to vector<4x32xf32>
    %c0_45 = arith.constant 0 : index
    %c0_46 = arith.constant 0 : index
    %115 = vector.load %arg4[%c0_45, %c0_46] : memref<1x32xf32, #tpu.memory_space<vmem>>, vector<1x32xf32>
    %116 = vector.broadcast %115 : vector<1x32xf32> to vector<4x32xf32>
    %117 = arith.addf %114, %116 : vector<4x32xf32>
    %118 = arith.mulf %104, %117 : vector<4x32xf32>
    %119 = arith.addf %113, %118 : vector<4x32xf32>
    %120 = math.tanh %119 : vector<4x32xf32>
    %cst_47 = arith.constant 1.000000e+00 : f32
    %121 = vector.broadcast %cst_47 : f32 to vector<4x32xf32>
    %122 = arith.subf %121, %112 : vector<4x32xf32>
    %123 = arith.mulf %122, %120 : vector<4x32xf32>
    %124 = arith.mulf %112, %82 : vector<4x32xf32>
    %125 = arith.addf %123, %124 : vector<4x32xf32>
    %126 = arith.index_cast %c2_i32 : i32 to index
    %c0_48 = arith.constant 0 : index
    %c0_49 = arith.constant 0 : index
    %127 = vector.load %arg5[%126, %c0_48, %c0_49] : memref<8x4x32xf32, #tpu.memory_space<vmem>>, vector<1x4x32xf32>
    %128 = vector.shape_cast %127 : vector<1x4x32xf32> to vector<4x32xf32>
    %129 = vector.shape_cast %125 : vector<4x32xf32> to vector<1x4x32xf32>
    tpu.vector_store %arg5[%126, %c0_48, %c0_49], %129 {strides = array<i32>} : memref<8x4x32xf32, #tpu.memory_space<vmem>>, vector<1x4x32xf32>,
    %c3_i32 = arith.constant 3 : i32
    %130 = arith.index_cast %c3_i32 : i32 to index
    %c0_50 = arith.constant 0 : index
    %c0_51 = arith.constant 0 : index
    %131 = vector.load %arg0[%130, %c0_50, %c0_51] : memref<8x4x16xf32, #tpu.memory_space<vmem>>, vector<1x4x16xf32>
    %132 = vector.shape_cast %131 : vector<1x4x16xf32> to vector<4x16xf32>
    %c0_52 = arith.constant 0 : index
    %c0_53 = arith.constant 0 : index
    %133 = vector.load %arg1[%c0_52, %c0_53] : memref<16x96xf32, #tpu.memory_space<vmem>>, vector<16x96xf32>
    %cst_54 = arith.constant dense<0.000000e+00> : vector<4x96xf32>
    %134 = tpu.matmul %132, %133, %cst_54 {dimension_numbers = #tpu.dot_dimension_numbers<[1], [0], [0], [1], [0, 0, 1, 1], [], []>} : vector<4x16xf32>, vector<16x96xf32>, vector<4x96xf32> -> vector<4x96xf32>
    %c0_55 = arith.constant 0 : index
    %c0_56 = arith.constant 0 : index
    %135 = vector.load %arg3[%c0_55, %c0_56] : memref<1x96xf32, #tpu.memory_space<vmem>>, vector<1x96xf32>
    %136 = vector.broadcast %135 : vector<1x96xf32> to vector<4x96xf32>
    %137 = arith.addf %134, %136 : vector<4x96xf32>
    %c0_57 = arith.constant 0 : index
    %c0_58 = arith.constant 0 : index
    %138 = vector.load %arg2[%c0_57, %c0_58] : memref<32x96xf32, #tpu.memory_space<vmem>>, vector<32x96xf32>
    %cst_59 = arith.constant dense<0.000000e+00> : vector<4x96xf32>
    %139 = tpu.matmul %125, %138, %cst_59 {dimension_numbers = #tpu.dot_dimension_numbers<[1], [0], [0], [1], [0, 0, 1, 1], [], []>} : vector<4x32xf32>, vector<32x96xf32>, vector<4x96xf32> -> vector<4x96xf32>
    %140 = vector.extract_strided_slice %137 {offsets = [0, 0], sizes = [4, 32], strides = [1, 1]} : vector<4x96xf32> to vector<4x32xf32>
    %141 = vector.extract_strided_slice %139 {offsets = [0, 0], sizes = [4, 32], strides = [1, 1]} : vector<4x96xf32> to vector<4x32xf32>
    %142 = arith.addf %140, %141 : vector<4x32xf32>
    %143 = arith.negf %142 : vector<4x32xf32>
    %144 = math.exp %143 : vector<4x32xf32>
    %cst_60 = arith.constant 1.000000e+00 : f32
    %145 = vector.broadcast %cst_60 : f32 to vector<4x32xf32>
    %146 = arith.addf %145, %144 : vector<4x32xf32>
    %147 = arith.divf %145, %146 : vector<4x32xf32>
    %148 = vector.extract_strided_slice %137 {offsets = [0, 32], sizes = [4, 32], strides = [1, 1]} : vector<4x96xf32> to vector<4x32xf32>
    %149 = vector.extract_strided_slice %139 {offsets = [0, 32], sizes = [4, 32], strides = [1, 1]} : vector<4x96xf32> to vector<4x32xf32>
    %150 = arith.addf %148, %149 : vector<4x32xf32>
    %151 = arith.negf %150 : vector<4x32xf32>
    %152 = math.exp %151 : vector<4x32xf32>
    %cst_61 = arith.constant 1.000000e+00 : f32
    %153 = vector.broadcast %cst_61 : f32 to vector<4x32xf32>
    %154 = arith.addf %153, %152 : vector<4x32xf32>
    %155 = arith.divf %153, %154 : vector<4x32xf32>
    %156 = vector.extract_strided_slice %137 {offsets = [0, 64], sizes = [4, 32], strides = [1, 1]} : vector<4x96xf32> to vector<4x32xf32>
    %157 = vector.extract_strided_slice %139 {offsets = [0, 64], sizes = [4, 32], strides = [1, 1]} : vector<4x96xf32> to vector<4x32xf32>
    %c0_62 = arith.constant 0 : index
    %c0_63 = arith.constant 0 : index
    %158 = vector.load %arg4[%c0_62, %c0_63] : memref<1x32xf32, #tpu.memory_space<vmem>>, vector<1x32xf32>
    %159 = vector.broadcast %158 : vector<1x32xf32> to vector<4x32xf32>
    %160 = arith.addf %157, %159 : vector<4x32xf32>
    %161 = arith.mulf %147, %160 : vector<4x32xf32>
    %162 = arith.addf %156, %161 : vector<4x32xf32>
    %163 = math.tanh %162 : vector<4x32xf32>
    %cst_64 = arith.constant 1.000000e+00 : f32
    %164 = vector.broadcast %cst_64 : f32 to vector<4x32xf32>
    %165 = arith.subf %164, %155 : vector<4x32xf32>
    %166 = arith.mulf %165, %163 : vector<4x32xf32>
    %167 = arith.mulf %155, %125 : vector<4x32xf32>
    %168 = arith.addf %166, %167 : vector<4x32xf32>
    %169 = arith.index_cast %c3_i32 : i32 to index
    %c0_65 = arith.constant 0 : index
    %c0_66 = arith.constant 0 : index
    %170 = vector.load %arg5[%169, %c0_65, %c0_66] : memref<8x4x32xf32, #tpu.memory_space<vmem>>, vector<1x4x32xf32>
    %171 = vector.shape_cast %170 : vector<1x4x32xf32> to vector<4x32xf32>
    %172 = vector.shape_cast %168 : vector<4x32xf32> to vector<1x4x32xf32>
    tpu.vector_store %arg5[%169, %c0_65, %c0_66], %172 {strides = array<i32>} : memref<8x4x32xf32, #tpu.memory_space<vmem>>, vector<1x4x32xf32>,
    %c4_i32 = arith.constant 4 : i32
    %173 = arith.index_cast %c4_i32 : i32 to index
    %c0_67 = arith.constant 0 : index
    %c0_68 = arith.constant 0 : index
    %174 = vector.load %arg0[%173, %c0_67, %c0_68] : memref<8x4x16xf32, #tpu.memory_space<vmem>>, vector<1x4x16xf32>
    %175 = vector.shape_cast %174 : vector<1x4x16xf32> to vector<4x16xf32>
    %c0_69 = arith.constant 0 : index
    %c0_70 = arith.constant 0 : index
    %176 = vector.load %arg1[%c0_69, %c0_70] : memref<16x96xf32, #tpu.memory_space<vmem>>, vector<16x96xf32>
    %cst_71 = arith.constant dense<0.000000e+00> : vector<4x96xf32>
    %177 = tpu.matmul %175, %176, %cst_71 {dimension_numbers = #tpu.dot_dimension_numbers<[1], [0], [0], [1], [0, 0, 1, 1], [], []>} : vector<4x16xf32>, vector<16x96xf32>, vector<4x96xf32> -> vector<4x96xf32>
    %c0_72 = arith.constant 0 : index
    %c0_73 = arith.constant 0 : index
    %178 = vector.load %arg3[%c0_72, %c0_73] : memref<1x96xf32, #tpu.memory_space<vmem>>, vector<1x96xf32>
    %179 = vector.broadcast %178 : vector<1x96xf32> to vector<4x96xf32>
    %180 = arith.addf %177, %179 : vector<4x96xf32>
    %c0_74 = arith.constant 0 : index
    %c0_75 = arith.constant 0 : index
    %181 = vector.load %arg2[%c0_74, %c0_75] : memref<32x96xf32, #tpu.memory_space<vmem>>, vector<32x96xf32>
    %cst_76 = arith.constant dense<0.000000e+00> : vector<4x96xf32>
    %182 = tpu.matmul %168, %181, %cst_76 {dimension_numbers = #tpu.dot_dimension_numbers<[1], [0], [0], [1], [0, 0, 1, 1], [], []>} : vector<4x32xf32>, vector<32x96xf32>, vector<4x96xf32> -> vector<4x96xf32>
    %183 = vector.extract_strided_slice %180 {offsets = [0, 0], sizes = [4, 32], strides = [1, 1]} : vector<4x96xf32> to vector<4x32xf32>
    %184 = vector.extract_strided_slice %182 {offsets = [0, 0], sizes = [4, 32], strides = [1, 1]} : vector<4x96xf32> to vector<4x32xf32>
    %185 = arith.addf %183, %184 : vector<4x32xf32>
    %186 = arith.negf %185 : vector<4x32xf32>
    %187 = math.exp %186 : vector<4x32xf32>
    %cst_77 = arith.constant 1.000000e+00 : f32
    %188 = vector.broadcast %cst_77 : f32 to vector<4x32xf32>
    %189 = arith.addf %188, %187 : vector<4x32xf32>
    %190 = arith.divf %188, %189 : vector<4x32xf32>
    %191 = vector.extract_strided_slice %180 {offsets = [0, 32], sizes = [4, 32], strides = [1, 1]} : vector<4x96xf32> to vector<4x32xf32>
    %192 = vector.extract_strided_slice %182 {offsets = [0, 32], sizes = [4, 32], strides = [1, 1]} : vector<4x96xf32> to vector<4x32xf32>
    %193 = arith.addf %191, %192 : vector<4x32xf32>
    %194 = arith.negf %193 : vector<4x32xf32>
    %195 = math.exp %194 : vector<4x32xf32>
    %cst_78 = arith.constant 1.000000e+00 : f32
    %196 = vector.broadcast %cst_78 : f32 to vector<4x32xf32>
    %197 = arith.addf %196, %195 : vector<4x32xf32>
    %198 = arith.divf %196, %197 : vector<4x32xf32>
    %199 = vector.extract_strided_slice %180 {offsets = [0, 64], sizes = [4, 32], strides = [1, 1]} : vector<4x96xf32> to vector<4x32xf32>
    %200 = vector.extract_strided_slice %182 {offsets = [0, 64], sizes = [4, 32], strides = [1, 1]} : vector<4x96xf32> to vector<4x32xf32>
    %c0_79 = arith.constant 0 : index
    %c0_80 = arith.constant 0 : index
    %201 = vector.load %arg4[%c0_79, %c0_80] : memref<1x32xf32, #tpu.memory_space<vmem>>, vector<1x32xf32>
    %202 = vector.broadcast %201 : vector<1x32xf32> to vector<4x32xf32>
    %203 = arith.addf %200, %202 : vector<4x32xf32>
    %204 = arith.mulf %190, %203 : vector<4x32xf32>
    %205 = arith.addf %199, %204 : vector<4x32xf32>
    %206 = math.tanh %205 : vector<4x32xf32>
    %cst_81 = arith.constant 1.000000e+00 : f32
    %207 = vector.broadcast %cst_81 : f32 to vector<4x32xf32>
    %208 = arith.subf %207, %198 : vector<4x32xf32>
    %209 = arith.mulf %208, %206 : vector<4x32xf32>
    %210 = arith.mulf %198, %168 : vector<4x32xf32>
    %211 = arith.addf %209, %210 : vector<4x32xf32>
    %212 = arith.index_cast %c4_i32 : i32 to index
    %c0_82 = arith.constant 0 : index
    %c0_83 = arith.constant 0 : index
    %213 = vector.load %arg5[%212, %c0_82, %c0_83] : memref<8x4x32xf32, #tpu.memory_space<vmem>>, vector<1x4x32xf32>
    %214 = vector.shape_cast %213 : vector<1x4x32xf32> to vector<4x32xf32>
    %215 = vector.shape_cast %211 : vector<4x32xf32> to vector<1x4x32xf32>
    tpu.vector_store %arg5[%212, %c0_82, %c0_83], %215 {strides = array<i32>} : memref<8x4x32xf32, #tpu.memory_space<vmem>>, vector<1x4x32xf32>,
    %c5_i32 = arith.constant 5 : i32
    %216 = arith.index_cast %c5_i32 : i32 to index
    %c0_84 = arith.constant 0 : index
    %c0_85 = arith.constant 0 : index
    %217 = vector.load %arg0[%216, %c0_84, %c0_85] : memref<8x4x16xf32, #tpu.memory_space<vmem>>, vector<1x4x16xf32>
    %218 = vector.shape_cast %217 : vector<1x4x16xf32> to vector<4x16xf32>
    %c0_86 = arith.constant 0 : index
    %c0_87 = arith.constant 0 : index
    %219 = vector.load %arg1[%c0_86, %c0_87] : memref<16x96xf32, #tpu.memory_space<vmem>>, vector<16x96xf32>
    %cst_88 = arith.constant dense<0.000000e+00> : vector<4x96xf32>
    %220 = tpu.matmul %218, %219, %cst_88 {dimension_numbers = #tpu.dot_dimension_numbers<[1], [0], [0], [1], [0, 0, 1, 1], [], []>} : vector<4x16xf32>, vector<16x96xf32>, vector<4x96xf32> -> vector<4x96xf32>
    %c0_89 = arith.constant 0 : index
    %c0_90 = arith.constant 0 : index
    %221 = vector.load %arg3[%c0_89, %c0_90] : memref<1x96xf32, #tpu.memory_space<vmem>>, vector<1x96xf32>
    %222 = vector.broadcast %221 : vector<1x96xf32> to vector<4x96xf32>
    %223 = arith.addf %220, %222 : vector<4x96xf32>
    %c0_91 = arith.constant 0 : index
    %c0_92 = arith.constant 0 : index
    %224 = vector.load %arg2[%c0_91, %c0_92] : memref<32x96xf32, #tpu.memory_space<vmem>>, vector<32x96xf32>
    %cst_93 = arith.constant dense<0.000000e+00> : vector<4x96xf32>
    %225 = tpu.matmul %211, %224, %cst_93 {dimension_numbers = #tpu.dot_dimension_numbers<[1], [0], [0], [1], [0, 0, 1, 1], [], []>} : vector<4x32xf32>, vector<32x96xf32>, vector<4x96xf32> -> vector<4x96xf32>
    %226 = vector.extract_strided_slice %223 {offsets = [0, 0], sizes = [4, 32], strides = [1, 1]} : vector<4x96xf32> to vector<4x32xf32>
    %227 = vector.extract_strided_slice %225 {offsets = [0, 0], sizes = [4, 32], strides = [1, 1]} : vector<4x96xf32> to vector<4x32xf32>
    %228 = arith.addf %226, %227 : vector<4x32xf32>
    %229 = arith.negf %228 : vector<4x32xf32>
    %230 = math.exp %229 : vector<4x32xf32>
    %cst_94 = arith.constant 1.000000e+00 : f32
    %231 = vector.broadcast %cst_94 : f32 to vector<4x32xf32>
    %232 = arith.addf %231, %230 : vector<4x32xf32>
    %233 = arith.divf %231, %232 : vector<4x32xf32>
    %234 = vector.extract_strided_slice %223 {offsets = [0, 32], sizes = [4, 32], strides = [1, 1]} : vector<4x96xf32> to vector<4x32xf32>
    %235 = vector.extract_strided_slice %225 {offsets = [0, 32], sizes = [4, 32], strides = [1, 1]} : vector<4x96xf32> to vector<4x32xf32>
    %236 = arith.addf %234, %235 : vector<4x32xf32>
    %237 = arith.negf %236 : vector<4x32xf32>
    %238 = math.exp %237 : vector<4x32xf32>
    %cst_95 = arith.constant 1.000000e+00 : f32
    %239 = vector.broadcast %cst_95 : f32 to vector<4x32xf32>
    %240 = arith.addf %239, %238 : vector<4x32xf32>
    %241 = arith.divf %239, %240 : vector<4x32xf32>
    %242 = vector.extract_strided_slice %223 {offsets = [0, 64], sizes = [4, 32], strides = [1, 1]} : vector<4x96xf32> to vector<4x32xf32>
    %243 = vector.extract_strided_slice %225 {offsets = [0, 64], sizes = [4, 32], strides = [1, 1]} : vector<4x96xf32> to vector<4x32xf32>
    %c0_96 = arith.constant 0 : index
    %c0_97 = arith.constant 0 : index
    %244 = vector.load %arg4[%c0_96, %c0_97] : memref<1x32xf32, #tpu.memory_space<vmem>>, vector<1x32xf32>
    %245 = vector.broadcast %244 : vector<1x32xf32> to vector<4x32xf32>
    %246 = arith.addf %243, %245 : vector<4x32xf32>
    %247 = arith.mulf %233, %246 : vector<4x32xf32>
    %248 = arith.addf %242, %247 : vector<4x32xf32>
    %249 = math.tanh %248 : vector<4x32xf32>
    %cst_98 = arith.constant 1.000000e+00 : f32
    %250 = vector.broadcast %cst_98 : f32 to vector<4x32xf32>
    %251 = arith.subf %250, %241 : vector<4x32xf32>
    %252 = arith.mulf %251, %249 : vector<4x32xf32>
    %253 = arith.mulf %241, %211 : vector<4x32xf32>
    %254 = arith.addf %252, %253 : vector<4x32xf32>
    %255 = arith.index_cast %c5_i32 : i32 to index
    %c0_99 = arith.constant 0 : index
    %c0_100 = arith.constant 0 : index
    %256 = vector.load %arg5[%255, %c0_99, %c0_100] : memref<8x4x32xf32, #tpu.memory_space<vmem>>, vector<1x4x32xf32>
    %257 = vector.shape_cast %256 : vector<1x4x32xf32> to vector<4x32xf32>
    %258 = vector.shape_cast %254 : vector<4x32xf32> to vector<1x4x32xf32>
    tpu.vector_store %arg5[%255, %c0_99, %c0_100], %258 {strides = array<i32>} : memref<8x4x32xf32, #tpu.memory_space<vmem>>, vector<1x4x32xf32>,
    %c6_i32 = arith.constant 6 : i32
    %259 = arith.index_cast %c6_i32 : i32 to index
    %c0_101 = arith.constant 0 : index
    %c0_102 = arith.constant 0 : index
    %260 = vector.load %arg0[%259, %c0_101, %c0_102] : memref<8x4x16xf32, #tpu.memory_space<vmem>>, vector<1x4x16xf32>
    %261 = vector.shape_cast %260 : vector<1x4x16xf32> to vector<4x16xf32>
    %c0_103 = arith.constant 0 : index
    %c0_104 = arith.constant 0 : index
    %262 = vector.load %arg1[%c0_103, %c0_104] : memref<16x96xf32, #tpu.memory_space<vmem>>, vector<16x96xf32>
    %cst_105 = arith.constant dense<0.000000e+00> : vector<4x96xf32>
    %263 = tpu.matmul %261, %262, %cst_105 {dimension_numbers = #tpu.dot_dimension_numbers<[1], [0], [0], [1], [0, 0, 1, 1], [], []>} : vector<4x16xf32>, vector<16x96xf32>, vector<4x96xf32> -> vector<4x96xf32>
    %c0_106 = arith.constant 0 : index
    %c0_107 = arith.constant 0 : index
    %264 = vector.load %arg3[%c0_106, %c0_107] : memref<1x96xf32, #tpu.memory_space<vmem>>, vector<1x96xf32>
    %265 = vector.broadcast %264 : vector<1x96xf32> to vector<4x96xf32>
    %266 = arith.addf %263, %265 : vector<4x96xf32>
    %c0_108 = arith.constant 0 : index
    %c0_109 = arith.constant 0 : index
    %267 = vector.load %arg2[%c0_108, %c0_109] : memref<32x96xf32, #tpu.memory_space<vmem>>, vector<32x96xf32>
    %cst_110 = arith.constant dense<0.000000e+00> : vector<4x96xf32>
    %268 = tpu.matmul %254, %267, %cst_110 {dimension_numbers = #tpu.dot_dimension_numbers<[1], [0], [0], [1], [0, 0, 1, 1], [], []>} : vector<4x32xf32>, vector<32x96xf32>, vector<4x96xf32> -> vector<4x96xf32>
    %269 = vector.extract_strided_slice %266 {offsets = [0, 0], sizes = [4, 32], strides = [1, 1]} : vector<4x96xf32> to vector<4x32xf32>
    %270 = vector.extract_strided_slice %268 {offsets = [0, 0], sizes = [4, 32], strides = [1, 1]} : vector<4x96xf32> to vector<4x32xf32>
    %271 = arith.addf %269, %270 : vector<4x32xf32>
    %272 = arith.negf %271 : vector<4x32xf32>
    %273 = math.exp %272 : vector<4x32xf32>
    %cst_111 = arith.constant 1.000000e+00 : f32
    %274 = vector.broadcast %cst_111 : f32 to vector<4x32xf32>
    %275 = arith.addf %274, %273 : vector<4x32xf32>
    %276 = arith.divf %274, %275 : vector<4x32xf32>
    %277 = vector.extract_strided_slice %266 {offsets = [0, 32], sizes = [4, 32], strides = [1, 1]} : vector<4x96xf32> to vector<4x32xf32>
    %278 = vector.extract_strided_slice %268 {offsets = [0, 32], sizes = [4, 32], strides = [1, 1]} : vector<4x96xf32> to vector<4x32xf32>
    %279 = arith.addf %277, %278 : vector<4x32xf32>
    %280 = arith.negf %279 : vector<4x32xf32>
    %281 = math.exp %280 : vector<4x32xf32>
    %cst_112 = arith.constant 1.000000e+00 : f32
    %282 = vector.broadcast %cst_112 : f32 to vector<4x32xf32>
    %283 = arith.addf %282, %281 : vector<4x32xf32>
    %284 = arith.divf %282, %283 : vector<4x32xf32>
    %285 = vector.extract_strided_slice %266 {offsets = [0, 64], sizes = [4, 32], strides = [1, 1]} : vector<4x96xf32> to vector<4x32xf32>
    %286 = vector.extract_strided_slice %268 {offsets = [0, 64], sizes = [4, 32], strides = [1, 1]} : vector<4x96xf32> to vector<4x32xf32>
    %c0_113 = arith.constant 0 : index
    %c0_114 = arith.constant 0 : index
    %287 = vector.load %arg4[%c0_113, %c0_114] : memref<1x32xf32, #tpu.memory_space<vmem>>, vector<1x32xf32>
    %288 = vector.broadcast %287 : vector<1x32xf32> to vector<4x32xf32>
    %289 = arith.addf %286, %288 : vector<4x32xf32>
    %290 = arith.mulf %276, %289 : vector<4x32xf32>
    %291 = arith.addf %285, %290 : vector<4x32xf32>
    %292 = math.tanh %291 : vector<4x32xf32>
    %cst_115 = arith.constant 1.000000e+00 : f32
    %293 = vector.broadcast %cst_115 : f32 to vector<4x32xf32>
    %294 = arith.subf %293, %284 : vector<4x32xf32>
    %295 = arith.mulf %294, %292 : vector<4x32xf32>
    %296 = arith.mulf %284, %254 : vector<4x32xf32>
    %297 = arith.addf %295, %296 : vector<4x32xf32>
    %298 = arith.index_cast %c6_i32 : i32 to index
    %c0_116 = arith.constant 0 : index
    %c0_117 = arith.constant 0 : index
    %299 = vector.load %arg5[%298, %c0_116, %c0_117] : memref<8x4x32xf32, #tpu.memory_space<vmem>>, vector<1x4x32xf32>
    %300 = vector.shape_cast %299 : vector<1x4x32xf32> to vector<4x32xf32>
    %301 = vector.shape_cast %297 : vector<4x32xf32> to vector<1x4x32xf32>
    tpu.vector_store %arg5[%298, %c0_116, %c0_117], %301 {strides = array<i32>} : memref<8x4x32xf32, #tpu.memory_space<vmem>>, vector<1x4x32xf32>,
    %c7_i32 = arith.constant 7 : i32
    %302 = arith.index_cast %c7_i32 : i32 to index
    %c0_118 = arith.constant 0 : index
    %c0_119 = arith.constant 0 : index
    %303 = vector.load %arg0[%302, %c0_118, %c0_119] : memref<8x4x16xf32, #tpu.memory_space<vmem>>, vector<1x4x16xf32>
    %304 = vector.shape_cast %303 : vector<1x4x16xf32> to vector<4x16xf32>
    %c0_120 = arith.constant 0 : index
    %c0_121 = arith.constant 0 : index
    %305 = vector.load %arg1[%c0_120, %c0_121] : memref<16x96xf32, #tpu.memory_space<vmem>>, vector<16x96xf32>
    %cst_122 = arith.constant dense<0.000000e+00> : vector<4x96xf32>
    %306 = tpu.matmul %304, %305, %cst_122 {dimension_numbers = #tpu.dot_dimension_numbers<[1], [0], [0], [1], [0, 0, 1, 1], [], []>} : vector<4x16xf32>, vector<16x96xf32>, vector<4x96xf32> -> vector<4x96xf32>
    %c0_123 = arith.constant 0 : index
    %c0_124 = arith.constant 0 : index
    %307 = vector.load %arg3[%c0_123, %c0_124] : memref<1x96xf32, #tpu.memory_space<vmem>>, vector<1x96xf32>
    %308 = vector.broadcast %307 : vector<1x96xf32> to vector<4x96xf32>
    %309 = arith.addf %306, %308 : vector<4x96xf32>
    %c0_125 = arith.constant 0 : index
    %c0_126 = arith.constant 0 : index
    %310 = vector.load %arg2[%c0_125, %c0_126] : memref<32x96xf32, #tpu.memory_space<vmem>>, vector<32x96xf32>
    %cst_127 = arith.constant dense<0.000000e+00> : vector<4x96xf32>
    %311 = tpu.matmul %297, %310, %cst_127 {dimension_numbers = #tpu.dot_dimension_numbers<[1], [0], [0], [1], [0, 0, 1, 1], [], []>} : vector<4x32xf32>, vector<32x96xf32>, vector<4x96xf32> -> vector<4x96xf32>
    %312 = vector.extract_strided_slice %309 {offsets = [0, 0], sizes = [4, 32], strides = [1, 1]} : vector<4x96xf32> to vector<4x32xf32>
    %313 = vector.extract_strided_slice %311 {offsets = [0, 0], sizes = [4, 32], strides = [1, 1]} : vector<4x96xf32> to vector<4x32xf32>
    %314 = arith.addf %312, %313 : vector<4x32xf32>
    %315 = arith.negf %314 : vector<4x32xf32>
    %316 = math.exp %315 : vector<4x32xf32>
    %cst_128 = arith.constant 1.000000e+00 : f32
    %317 = vector.broadcast %cst_128 : f32 to vector<4x32xf32>
    %318 = arith.addf %317, %316 : vector<4x32xf32>
    %319 = arith.divf %317, %318 : vector<4x32xf32>
    %320 = vector.extract_strided_slice %309 {offsets = [0, 32], sizes = [4, 32], strides = [1, 1]} : vector<4x96xf32> to vector<4x32xf32>
    %321 = vector.extract_strided_slice %311 {offsets = [0, 32], sizes = [4, 32], strides = [1, 1]} : vector<4x96xf32> to vector<4x32xf32>
    %322 = arith.addf %320, %321 : vector<4x32xf32>
    %323 = arith.negf %322 : vector<4x32xf32>
    %324 = math.exp %323 : vector<4x32xf32>
    %cst_129 = arith.constant 1.000000e+00 : f32
    %325 = vector.broadcast %cst_129 : f32 to vector<4x32xf32>
    %326 = arith.addf %325, %324 : vector<4x32xf32>
    %327 = arith.divf %325, %326 : vector<4x32xf32>
    %328 = vector.extract_strided_slice %309 {offsets = [0, 64], sizes = [4, 32], strides = [1, 1]} : vector<4x96xf32> to vector<4x32xf32>
    %329 = vector.extract_strided_slice %311 {offsets = [0, 64], sizes = [4, 32], strides = [1, 1]} : vector<4x96xf32> to vector<4x32xf32>
    %c0_130 = arith.constant 0 : index
    %c0_131 = arith.constant 0 : index
    %330 = vector.load %arg4[%c0_130, %c0_131] : memref<1x32xf32, #tpu.memory_space<vmem>>, vector<1x32xf32>
    %331 = vector.broadcast %330 : vector<1x32xf32> to vector<4x32xf32>
    %332 = arith.addf %329, %331 : vector<4x32xf32>
    %333 = arith.mulf %319, %332 : vector<4x32xf32>
    %334 = arith.addf %328, %333 : vector<4x32xf32>
    %335 = math.tanh %334 : vector<4x32xf32>
    %cst_132 = arith.constant 1.000000e+00 : f32
    %336 = vector.broadcast %cst_132 : f32 to vector<4x32xf32>
    %337 = arith.subf %336, %327 : vector<4x32xf32>
    %338 = arith.mulf %337, %335 : vector<4x32xf32>
    %339 = arith.mulf %327, %297 : vector<4x32xf32>
    %340 = arith.addf %338, %339 : vector<4x32xf32>
    %341 = arith.index_cast %c7_i32 : i32 to index
    %c0_133 = arith.constant 0 : index
    %c0_134 = arith.constant 0 : index
    %342 = vector.load %arg5[%341, %c0_133, %c0_134] : memref<8x4x32xf32, #tpu.memory_space<vmem>>, vector<1x4x32xf32>
    %343 = vector.shape_cast %342 : vector<1x4x32xf32> to vector<4x32xf32>
    %344 = vector.shape_cast %340 : vector<4x32xf32> to vector<1x4x32xf32>
    tpu.vector_store %arg5[%341, %c0_133, %c0_134], %344 {strides = array<i32>} : memref<8x4x32xf32, #tpu.memory_space<vmem>>, vector<1x4x32xf32>,
    %c8_i32 = arith.constant 8 : i32
    return
  }
}

module attributes {stable_mosaic.version = 11 : i64} {
  func.func @fc_projection_kernel(%arg0: memref<32x32xf32, #tpu.memory_space<vmem>>, %arg1: memref<32x256xf32, #tpu.memory_space<vmem>>, %arg2: memref<1x256xf32, #tpu.memory_space<vmem>>, %arg3: memref<256x128xf32, #tpu.memory_space<vmem>>, %arg4: memref<1x128xf32, #tpu.memory_space<vmem>>, %arg5: memref<32x128xf32, #tpu.memory_space<vmem>>) attributes {dimension_semantics = [], scalar_prefetch = 0 : i64, scratch_operands = 0 : i64, tpu.core_type = #tpu.core_type<tc>} {
    %c0 = arith.constant 0 : index
    %c0_0 = arith.constant 0 : index
    %0 = vector.load %arg0[%c0, %c0_0] : memref<32x32xf32, #tpu.memory_space<vmem>>, vector<32x32xf32>
    %c0_1 = arith.constant 0 : index
    %c0_2 = arith.constant 0 : index
    %1 = vector.load %arg1[%c0_1, %c0_2] : memref<32x256xf32, #tpu.memory_space<vmem>>, vector<32x256xf32>
    %cst = arith.constant dense<0.000000e+00> : vector<32x256xf32>
    %2 = tpu.matmul %0, %1, %cst {dimension_numbers = #tpu.dot_dimension_numbers<[1], [0], [0], [1], [0, 0, 1, 1], [], []>} : vector<32x32xf32>, vector<32x256xf32>, vector<32x256xf32> -> vector<32x256xf32>
    %c0_3 = arith.constant 0 : index
    %c0_4 = arith.constant 0 : index
    %3 = vector.load %arg2[%c0_3, %c0_4] : memref<1x256xf32, #tpu.memory_space<vmem>>, vector<1x256xf32>
    %4 = vector.broadcast %3 : vector<1x256xf32> to vector<32x256xf32>
    %5 = arith.addf %2, %4 : vector<32x256xf32>
    %c0_5 = arith.constant 0 : index
    %c0_6 = arith.constant 0 : index
    %6 = vector.load %arg3[%c0_5, %c0_6] : memref<256x128xf32, #tpu.memory_space<vmem>>, vector<256x128xf32>
    %cst_7 = arith.constant dense<0.000000e+00> : vector<32x128xf32>
    %7 = tpu.matmul %5, %6, %cst_7 {dimension_numbers = #tpu.dot_dimension_numbers<[1], [0], [0], [1], [0, 0, 1, 1], [], []>} : vector<32x256xf32>, vector<256x128xf32>, vector<32x128xf32> -> vector<32x128xf32>
    %c0_8 = arith.constant 0 : index
    %c0_9 = arith.constant 0 : index
    %8 = vector.load %arg4[%c0_8, %c0_9] : memref<1x128xf32, #tpu.memory_space<vmem>>, vector<1x128xf32>
    %9 = vector.broadcast %8 : vector<1x128xf32> to vector<32x128xf32>
    %10 = arith.addf %7, %9 : vector<32x128xf32>
    %c0_10 = arith.constant 0 : index
    %c0_11 = arith.constant 0 : index
    %11 = vector.load %arg5[%c0_10, %c0_11] : memref<32x128xf32, #tpu.memory_space<vmem>>, vector<32x128xf32>
    tpu.vector_store %arg5[%c0_10, %c0_11], %10 {strides = array<i32>} : memref<32x128xf32, #tpu.memory_space<vmem>>, vector<32x128xf32>,
    return
  }
}

</mosaic_0001>

<llo_original>
// kernel: gru_forward.3
$region0: #{gru_forward.3}
  #allocation0 [shape = 'u32[]', space=smem, size = 0x4, offset = 0x4, fixed_abs, tag = 'smem constant byte address 0x4 - core index']
  #allocation1 [shape = 'u32[144,128]{1,0:T(1,128)}', space=vmem, size = 0x12000, scoped, tag = 'internal scratch']
  %s0 = inlined_call_operand.vmem [shape: f32[32,32], index: 0, kind: input, shape index: {}]
  %s1 = inlined_call_operand.vmem [shape: f32[32,256], index: 1, kind: input, shape index: {}]
  %s2 = inlined_call_operand.vmem [shape: f32[1,256], index: 2, kind: input, shape index: {}]
  %s3 = inlined_call_operand.vmem [shape: f32[256,128], index: 3, kind: input, shape index: {}]
  %s4 = inlined_call_operand.vmem [shape: f32[1,128], index: 4, kind: input, shape index: {}]
  %s5 = inlined_call_operand.hbm [shape: f32[32,128], index: 5, kind: output, shape index: {}]
  %s6 = sld [smem:[#allocation0]]
  $region30: #{gru_forward.3} parent=0
    _
  %s8 = ssub.s32 1, %s6
  %s9 = scalar_select 0, %s8, %s6
  $region1: #{gru_forward.3} parent=0
    #allocation2 [shape = 'u8[16384]{0}', space=vmem, size = 0x4000, scoped, tag = 'output window, operand 0, single buffered']
    #allocation3 [shape = 's32[1]{0}', space=sflag, size = 0x4, scoped, tag = 'scoped memory for gru_forward.3']
    %10 = vsyncpa [#allocation3], 0
    // Predicated region
    $region2: #{gru_forward.3} parent=1 // pred_check
      _
    $region3: #{gru_forward.3} parent=1 // pred_check_branch
      %12 = sbr.rel (0) target = $region5
    $region4: #{gru_forward.3} parent=1 // pred_region
      _
    $region5: #{gru_forward.3} parent=1 // pred_fallthru
      _
    // Predicated region
    $region6: #{gru_forward.3} parent=1 // pred_check
      _
    $region7: #{gru_forward.3} parent=1 // pred_check_branch
      %14 = sbr.rel (0) target = $region9
    $region8: #{gru_forward.3} parent=1 // pred_region
      _
    $region9: #{gru_forward.3} parent=1 // pred_fallthru
      _
    // Predicated region
    $region10: #{gru_forward.3} parent=1 // pred_check
      _
    $region11: #{gru_forward.3} parent=1 // pred_check_branch
      %16 = sbr.rel (0) target = $region13
    $region12: #{gru_forward.3} parent=1 // pred_region
      _
    $region13: #{gru_forward.3} parent=1 // pred_fallthru
      _
    // Predicated region
    $region14: #{gru_forward.3} parent=1 // pred_check
      _
    $region15: #{gru_forward.3} parent=1 // pred_check_branch
      %18 = sbr.rel (0) target = $region17
    $region16: #{gru_forward.3} parent=1 // pred_region
      _
    $region17: #{gru_forward.3} parent=1 // pred_fallthru
      _
    // Predicated region
    $region18: #{gru_forward.3} parent=1 // pred_check
      _
    $region19: #{gru_forward.3} parent=1 // pred_check_branch
      %20 = sbr.rel (0) target = $region21
    $region20: #{gru_forward.3} parent=1 // pred_region
      _
    $region21: #{gru_forward.3} parent=1 // pred_fallthru
      _
    %v21 = vld [vmem:[%s0] sm:$0xff]
    %v22 = vld [vmem:[%s0 + $0x8] sm:$0xff]
    %v23 = vld [vmem:[%s0 + $0x10] sm:$0xff]
    %v24 = vld [vmem:[%s0 + $0x18] sm:$0xff]
    %v25 = vld [vmem:[%s1] sm:$0xff]
    %v26 = vld [vmem:[%s1 + $0x8] sm:$0xff]
    %v27 = vld [vmem:[%s1 + $0x10] sm:$0xff]
    %v28 = vld [vmem:[%s1 + $0x18] sm:$0xff]
    %v29 = vld [vmem:[%s1 + $0x20] sm:$0xff]
    %v30 = vld [vmem:[%s1 + $0x28] sm:$0xff]
    %v31 = vld [vmem:[%s1 + $0x30] sm:$0xff]
    %v32 = vld [vmem:[%s1 + $0x38] sm:$0xff]
    %v33 = vld [vmem:[%s2] sm:$0x3]
    %v35 = vlaneseq
    %v36 = vshrl.u32 %v35, 7
    %v37 = vsub.s32 0, %v36
    %v38 = vrot.slane %v33, %v37
    %v39 = vlaneseq
    %v40 = vshrl.u32 %v39, 7
    %v41 = vsub.s32 1, %v40
    %v42 = vrot.slane %v33, %v41
    %vm45 = vcmask 261120
    %v47 = vsel %vm45, %v21, 0
    %v50 = vsel %vm45, %v22, 0
    %v53 = vsel %vm45, %v23, 0
    %v56 = vsel %vm45, %v24, 0
    %58 = vmatprep.subr.mxu0 0.0
    %59 = vmatpush1.msra.mxu0 0.0
    %60 = vmatprep.subr.mxu0 0.0
    %61 = vmatpush1.msra.mxu0 0.0
    %62 = vmatprep.subr.mxu0 0.0
    %63 = vmatpush1.msra.mxu0 0.0
    %64 = vmatprep.subr.mxu0 0.0
    %65 = vmatpush1.msra.mxu0 0.0
    %66 = vmatprep.subr.mxu0 0.0
    %67 = vmatpush1.msra.mxu0 0.0
    %68 = vmatprep.subr.mxu0 0.0
    %69 = vmatpush1.msra.mxu0 0.0
    %70 = vmatprep.subr.mxu0 0.0
    %71 = vmatpush1.msra.mxu0 0.0
    %72 = vmatprep.subr.mxu0 0.0
    %73 = vmatpush1.msra.mxu0 0.0
    %74 = vmatprep.subr.mxu0 0.0
    %75 = vmatpush1.msra.mxu0 0.0
    %76 = vmatprep.subr.mxu0 0.0
    %77 = vmatpush1.msra.mxu0 0.0
    %78 = vmatprep.subr.mxu0 0.0
    %79 = vmatpush1.msra.mxu0 0.0
    %80 = vmatprep.subr.mxu0 0.0
    %81 = vmatpush1.msra.mxu0 0.0
    %82 = vmatprep.subr.mxu0 %v32
    %83 = vmatpush1.msra.mxu0 %v31
    %84 = vmatprep.subr.mxu0 %v30
    %85 = vmatpush1.msra.mxu0 %v29
    %86 = vmatprep.subr.mxu0 %v28
    %87 = vmatpush1.msra.mxu0 %v27
    %88 = vmatprep.subr.mxu0 %v26
    %89 = vmatpush1.msra.mxu0 %v25
    %90 = vmatprep.subr.mxu0 0.0
    %91 = vmatpush2.msra.mxu0 0.0
    %92 = vmatprep.subr.mxu0 0.0
    %93 = vmatpush2.msra.mxu0 0.0
    %94 = vmatprep.subr.mxu0 0.0
    %95 = vmatpush2.msra.mxu0 0.0
    %96 = vmatprep.subr.mxu0 0.0
    %97 = vmatpush2.msra.mxu0 0.0
    %98 = vmatprep.subr.mxu0 0.0
    %99 = vmatpush2.msra.mxu0 0.0
    %100 = vmatprep.subr.mxu0 0.0
    %101 = vmatpush2.msra.mxu0 0.0
    %102 = vmatprep.subr.mxu0 0.0
    %103 = vmatpush2.msra.mxu0 0.0
    %104 = vmatprep.subr.mxu0 0.0
    %105 = vmatpush2.msra.mxu0 0.0
    %106 = vmatprep.subr.mxu0 0.0
    %107 = vmatpush2.msra.mxu0 0.0
    %108 = vmatprep.subr.mxu0 0.0
    %109 = vmatpush2.msra.mxu0 0.0
    %110 = vmatprep.subr.mxu0 0.0
    %111 = vmatpush2.msra.mxu0 0.0
    %112 = vmatprep.subr.mxu0 0.0
    %113 = vmatpush2.msra.mxu0 0.0
    %114 = vmatprep.subr.mxu0 0.0
    %115 = vmatpush2.msra.mxu0 0.0
    %116 = vmatprep.subr.mxu0 0.0
    %117 = vmatpush2.msra.mxu0 0.0
    %118 = vmatprep.subr.mxu0 0.0
    %119 = vmatpush2.msra.mxu0 0.0
    %120 = vmatprep.subr.mxu0 0.0
    %121 = vmatpush2.msra.mxu0 0.0
    %122 = vmatprep.mubr.f32.mxu0 0.0
    %123 = vmatmul.mubr.f32.gmra.mxu0 %v47
    %v124 = vpop.f32.mrf.mxu0
    %v125 = vadd.f32 %v38, %v124
    %v126 = vpop.f32.mrf.mxu0
    %v127 = vadd.f32 %v42, %v126
    %128 = vmatprep.mubr.f32.mxu0 0.0
    %129 = vmatmul.mubr.f32.gmra.mxu0 %v50
    %v130 = vpop.f32.mrf.mxu0
    %v131 = vadd.f32 %v38, %v130
    %v132 = vpop.f32.mrf.mxu0
    %v133 = vadd.f32 %v42, %v132
    %134 = vmatprep.mubr.f32.mxu0 0.0
    %135 = vmatmul.mubr.f32.gmra.mxu0 %v53
    %v136 = vpop.f32.mrf.mxu0
    %v137 = vadd.f32 %v38, %v136
    %v138 = vpop.f32.mrf.mxu0
    %v139 = vadd.f32 %v42, %v138
    %140 = vmatprep.mubr.f32.mxu0 0.0
    %141 = vmatmul.mubr.f32.gmra.mxu0 %v56
    %v142 = vpop.f32.mrf.mxu0
    %v143 = vadd.f32 %v38, %v142
    %v144 = vpop.f32.mrf.mxu0
    %v145 = vadd.f32 %v42, %v144
    %146 = vdwg.mxu0
    %v147 = vld [vmem:[%s3] sm:$0xff]
    %v148 = vld [vmem:[%s3 + $0x8] sm:$0xff]
    %v149 = vld [vmem:[%s3 + $0x10] sm:$0xff]
    %v150 = vld [vmem:[%s3 + $0x18] sm:$0xff]
    %v151 = vld [vmem:[%s3 + $0x20] sm:$0xff]
    %v152 = vld [vmem:[%s3 + $0x28] sm:$0xff]
    %v153 = vld [vmem:[%s3 + $0x30] sm:$0xff]
    %v154 = vld [vmem:[%s3 + $0x38] sm:$0xff]
    %v155 = vld [vmem:[%s3 + $0x40] sm:$0xff]
    %v156 = vld [vmem:[%s3 + $0x48] sm:$0xff]
    %v157 = vld [vmem:[%s3 + $0x50] sm:$0xff]
    %v158 = vld [vmem:[%s3 + $0x58] sm:$0xff]
    %v159 = vld [vmem:[%s3 + $0x60] sm:$0xff]
    %v160 = vld [vmem:[%s3 + $0x68] sm:$0xff]
    %v161 = vld [vmem:[%s3 + $0x70] sm:$0xff]
    %v162 = vld [vmem:[%s3 + $0x78] sm:$0xff]
    %v163 = vld [vmem:[%s3 + $0x80] sm:$0xff]
    %v164 = vld [vmem:[%s3 + $0x88] sm:$0xff]
    %v165 = vld [vmem:[%s3 + $0x90] sm:$0xff]
    %v166 = vld [vmem:[%s3 + $0x98] sm:$0xff]
    %v167 = vld [vmem:[%s3 + $0xa0] sm:$0xff]
    %v168 = vld [vmem:[%s3 + $0xa8] sm:$0xff]
    %v169 = vld [vmem:[%s3 + $0xb0] sm:$0xff]
    %v170 = vld [vmem:[%s3 + $0xb8] sm:$0xff]
    %v171 = vld [vmem:[%s3 + $0xc0] sm:$0xff]
    %v172 = vld [vmem:[%s3 + $0xc8] sm:$0xff]
    %v173 = vld [vmem:[%s3 + $0xd0] sm:$0xff]
    %v174 = vld [vmem:[%s3 + $0xd8] sm:$0xff]
    %v175 = vld [vmem:[%s3 + $0xe0] sm:$0xff]
    %v176 = vld [vmem:[%s3 + $0xe8] sm:$0xff]
    %v177 = vld [vmem:[%s3 + $0xf0] sm:$0xff]
    %v178 = vld [vmem:[%s3 + $0xf8] sm:$0xff]
    %v179 = vld [vmem:[%s4] sm:$0x1]
    %v181 = vlaneseq
    %v182 = vshrl.u32 %v181, 7
    %v183 = vsub.s32 0, %v182
    %v184 = vrot.slane %v179, %v183
    %186 = vmatprep.subr.mxu0 0.0
    %187 = vmatpush1.msra.mxu0 %v162
    %188 = vmatprep.subr.mxu0 0.0
    %189 = vmatpush1.msra.mxu0 %v161
    %190 = vmatprep.subr.mxu0 0.0
    %191 = vmatpush1.msra.mxu0 %v160
    %192 = vmatprep.subr.mxu0 0.0
    %193 = vmatpush1.msra.mxu0 %v159
    %194 = vmatprep.subr.mxu0 0.0
    %195 = vmatpush1.msra.mxu0 %v158
    %196 = vmatprep.subr.mxu0 0.0
    %197 = vmatpush1.msra.mxu0 %v157
    %198 = vmatprep.subr.mxu0 0.0
    %199 = vmatpush1.msra.mxu0 %v156
    %200 = vmatprep.subr.mxu0 0.0
    %201 = vmatpush1.msra.mxu0 %v155
    %202 = vmatprep.subr.mxu0 0.0
    %203 = vmatpush1.msra.mxu0 %v154
    %204 = vmatprep.subr.mxu0 0.0
    %205 = vmatpush1.msra.mxu0 %v153
    %206 = vmatprep.subr.mxu0 0.0
    %207 = vmatpush1.msra.mxu0 %v152
    %208 = vmatprep.subr.mxu0 0.0
    %209 = vmatpush1.msra.mxu0 %v151
    %210 = vmatprep.subr.mxu0 0.0
    %211 = vmatpush1.msra.mxu0 %v150
    %212 = vmatprep.subr.mxu0 0.0
    %213 = vmatpush1.msra.mxu0 %v149
    %214 = vmatprep.subr.mxu0 0.0
    %215 = vmatpush1.msra.mxu0 %v148
    %216 = vmatprep.subr.mxu0 0.0
    %217 = vmatpush1.msra.mxu0 %v147
    %218 = vmatprep.subr.mxu0 0.0
    %219 = vmatpush2.msra.mxu0 %v178
    %220 = vmatprep.subr.mxu0 0.0
    %221 = vmatpush2.msra.mxu0 %v177
    %222 = vmatprep.subr.mxu0 0.0
    %223 = vmatpush2.msra.mxu0 %v176
    %224 = vmatprep.subr.mxu0 0.0
    %225 = vmatpush2.msra.mxu0 %v175
    %226 = vmatprep.subr.mxu0 0.0
    %227 = vmatpush2.msra.mxu0 %v174
    %228 = vmatprep.subr.mxu0 0.0
    %229 = vmatpush2.msra.mxu0 %v173
    %230 = vmatprep.subr.mxu0 0.0
    %231 = vmatpush2.msra.mxu0 %v172
    %232 = vmatprep.subr.mxu0 0.0
    %233 = vmatpush2.msra.mxu0 %v171
    %234 = vmatprep.subr.mxu0 0.0
    %235 = vmatpush2.msra.mxu0 %v170
    %236 = vmatprep.subr.mxu0 0.0
    %237 = vmatpush2.msra.mxu0 %v169
    %238 = vmatprep.subr.mxu0 0.0
    %239 = vmatpush2.msra.mxu0 %v168
    %240 = vmatprep.subr.mxu0 0.0
    %241 = vmatpush2.msra.mxu0 %v167
    %242 = vmatprep.subr.mxu0 0.0
    %243 = vmatpush2.msra.mxu0 %v166
    %244 = vmatprep.subr.mxu0 0.0
    %245 = vmatpush2.msra.mxu0 %v165
    %246 = vmatprep.subr.mxu0 0.0
    %247 = vmatpush2.msra.mxu0 %v164
    %248 = vmatprep.subr.mxu0 0.0
    %249 = vmatpush2.msra.mxu0 %v163
    %250 = vmatprep.mubr.f32.mxu0 %v127
    %251 = vmatmul.mubr.f32.gmra.mxu0 %v125
    %v252 = vpop.f32.mrf.mxu0
    %v253 = vadd.f32 %v184, %v252
    %v254 = vpop.f32.mrf.mxu0
    %255 = vmatprep.mubr.f32.mxu0 %v133
    %256 = vmatmul.mubr.f32.gmra.mxu0 %v131
    %v257 = vpop.f32.mrf.mxu0
    %v258 = vadd.f32 %v184, %v257
    %v259 = vpop.f32.mrf.mxu0
    %260 = vmatprep.mubr.f32.mxu0 %v139
    %261 = vmatmul.mubr.f32.gmra.mxu0 %v137
    %v262 = vpop.f32.mrf.mxu0
    %v263 = vadd.f32 %v184, %v262
    %v264 = vpop.f32.mrf.mxu0
    %265 = vmatprep.mubr.f32.mxu0 %v145
    %266 = vmatmul.mubr.f32.gmra.mxu0 %v143
    %v267 = vpop.f32.mrf.mxu0
    %v268 = vadd.f32 %v184, %v267
    %v269 = vpop.f32.mrf.mxu0
    %270 = vdwg.mxu0
    %271 = vst [vmem:[#allocation2] sm:$0xff] %v253
    %272 = vst [vmem:[#allocation2 + $0x8] sm:$0xff] %v258
    %273 = vst [vmem:[#allocation2 + $0x10] sm:$0xff] %v263
    %274 = vst [vmem:[#allocation2 + $0x18] sm:$0xff] %v268
    // Predicated region
    $region22: #{gru_forward.3} parent=1 // pred_check
      _
    $region23: #{gru_forward.3} parent=1 // pred_check_branch
      %276 = sbr.rel (0) target = $region25
    $region24: #{gru_forward.3} parent=1 // pred_region
      %s278 = ssub.s32 512, 512
      %279 = vsyncadd [#allocation3], %s278
      %s280 = sshll.u32 [#allocation2], 4
      %s281 = int_to_ptr.vmem [resolvable:$true] %s280
      %286 = dma.vmem_to_hbm [thread:$0]  %s281, 512, %s5, [#allocation3], 128, 128, 8
    $region25: #{gru_forward.3} parent=1 // pred_fallthru
      _
    // Predicated region
    $region26: #{gru_forward.3} parent=1 // pred_check
      _
    $region27: #{gru_forward.3} parent=1 // pred_check_branch
      %288 = sbr.rel (0) target = $region29
    $region28: #{gru_forward.3} parent=1 // pred_region
      %289 = dma.done [#allocation3], 512
    $region29: #{gru_forward.3} parent=1 // pred_fallthru
      _
    %290 = vsyncpa [#allocation3], 1

// kernel: gru_forward.2
$region0: #{gru_forward.2}
  #allocation0 [shape = 'u32[]', space=smem, size = 0x4, offset = 0x4, fixed_abs, tag = 'smem constant byte address 0x4 - core index']
  #allocation1 [shape = 'u32[144,128]{1,0:T(1,128)}', space=vmem, size = 0x12000, scoped, tag = 'internal scratch']
  %s0 = inlined_call_operand.vmem [shape: f32[8,4,16], index: 0, kind: input, shape index: {}]
  %s1 = inlined_call_operand.vmem [shape: f32[16,96], index: 1, kind: input, shape index: {}]
  %s2 = inlined_call_operand.vmem [shape: f32[32,96], index: 2, kind: input, shape index: {}]
  %s3 = inlined_call_operand.vmem [shape: f32[1,96], index: 3, kind: input, shape index: {}]
  %s4 = inlined_call_operand.vmem [shape: f32[1,32], index: 4, kind: input, shape index: {}]
  %s5 = inlined_call_operand.vmem [shape: f32[8,4,32], index: 5, kind: output, shape index: {}]
  %s6 = sld [smem:[#allocation0]]
  $region30: #{gru_forward.2} parent=0
    _
  %s8 = ssub.s32 1, %s6
  %s9 = scalar_select 0, %s8, %s6
  // Predicated region
  $region2: #{gru_forward.2} parent=0 // pred_check
    _
  $region3: #{gru_forward.2} parent=0 // pred_check_branch
    %11 = sbr.rel (0) target = $region5
  $region4: #{gru_forward.2} parent=0 // pred_region
    _
  $region5: #{gru_forward.2} parent=0 // pred_fallthru
    _
  // Predicated region
  $region6: #{gru_forward.2} parent=0 // pred_check
    _
  $region7: #{gru_forward.2} parent=0 // pred_check_branch
    %13 = sbr.rel (0) target = $region9
  $region8: #{gru_forward.2} parent=0 // pred_region
    _
  $region9: #{gru_forward.2} parent=0 // pred_fallthru
    _
  // Predicated region
  $region10: #{gru_forward.2} parent=0 // pred_check
    _
  $region11: #{gru_forward.2} parent=0 // pred_check_branch
    %15 = sbr.rel (0) target = $region13
  $region12: #{gru_forward.2} parent=0 // pred_region
    _
  $region13: #{gru_forward.2} parent=0 // pred_fallthru
    _
  // Predicated region
  $region14: #{gru_forward.2} parent=0 // pred_check
    _
  $region15: #{gru_forward.2} parent=0 // pred_check_branch
    %17 = sbr.rel (0) target = $region17
  $region16: #{gru_forward.2} parent=0 // pred_region
    _
  $region17: #{gru_forward.2} parent=0 // pred_fallthru
    _
  // Predicated region
  $region18: #{gru_forward.2} parent=0 // pred_check
    _
  $region19: #{gru_forward.2} parent=0 // pred_check_branch
    %19 = sbr.rel (0) target = $region21
  $region20: #{gru_forward.2} parent=0 // pred_region
    _
  $region21: #{gru_forward.2} parent=0 // pred_fallthru
    _
  %v20 = vld [vmem:[%s0] sm:$0xf]
  %v21 = vld [vmem:[%s1] sm:$0xff]
  %v22 = vld [vmem:[%s1 + $0x8] sm:$0xff]
  %v23 = vld [vmem:[%s3] sm:$0x1]
  %v25 = vlaneseq
  %v26 = vshrl.u32 %v25, 7
  %v27 = vsub.s32 0, %v26
  %v28 = vrot.slane %v23, %v27
  %vm30 = vcmask 130048
  %v32 = vsel %vm30, %v20, 0
  %34 = vmatprep.subr.mxu0 0.0
  %35 = vmatpush1.msra.mxu0 0.0
  %36 = vmatprep.subr.mxu0 0.0
  %37 = vmatpush1.msra.mxu0 0.0
  %38 = vmatprep.subr.mxu0 0.0
  %39 = vmatpush1.msra.mxu0 0.0
  %40 = vmatprep.subr.mxu0 0.0
  %41 = vmatpush1.msra.mxu0 0.0
  %42 = vmatprep.subr.mxu0 0.0
  %43 = vmatpush1.msra.mxu0 0.0
  %44 = vmatprep.subr.mxu0 0.0
  %45 = vmatpush1.msra.mxu0 0.0
  %46 = vmatprep.subr.mxu0 0.0
  %47 = vmatpush1.msra.mxu0 0.0
  %48 = vmatprep.subr.mxu0 0.0
  %49 = vmatpush1.msra.mxu0 0.0
  %50 = vmatprep.subr.mxu0 0.0
  %51 = vmatpush1.msra.mxu0 0.0
  %52 = vmatprep.subr.mxu0 0.0
  %53 = vmatpush1.msra.mxu0 0.0
  %54 = vmatprep.subr.mxu0 0.0
  %55 = vmatpush1.msra.mxu0 0.0
  %56 = vmatprep.subr.mxu0 0.0
  %57 = vmatpush1.msra.mxu0 0.0
  %58 = vmatprep.subr.mxu0 0.0
  %59 = vmatpush1.msra.mxu0 0.0
  %60 = vmatprep.subr.mxu0 0.0
  %61 = vmatpush1.msra.mxu0 0.0
  %62 = vmatprep.subr.mxu0 0.0
  %63 = vmatpush1.msra.mxu0 %v22
  %64 = vmatprep.subr.mxu0 0.0
  %65 = vmatpush1.msra.mxu0 %v21
  %66 = vmatprep.subr.mxu0 0.0
  %67 = vmatpush2.msra.mxu0 0.0
  %68 = vmatprep.subr.mxu0 0.0
  %69 = vmatpush2.msra.mxu0 0.0
  %70 = vmatprep.subr.mxu0 0.0
  %71 = vmatpush2.msra.mxu0 0.0
  %72 = vmatprep.subr.mxu0 0.0
  %73 = vmatpush2.msra.mxu0 0.0
  %74 = vmatprep.subr.mxu0 0.0
  %75 = vmatpush2.msra.mxu0 0.0
  %76 = vmatprep.subr.mxu0 0.0
  %77 = vmatpush2.msra.mxu0 0.0
  %78 = vmatprep.subr.mxu0 0.0
  %79 = vmatpush2.msra.mxu0 0.0
  %80 = vmatprep.subr.mxu0 0.0
  %81 = vmatpush2.msra.mxu0 0.0
  %82 = vmatprep.subr.mxu0 0.0
  %83 = vmatpush2.msra.mxu0 0.0
  %84 = vmatprep.subr.mxu0 0.0
  %85 = vmatpush2.msra.mxu0 0.0
  %86 = vmatprep.subr.mxu0 0.0
  %87 = vmatpush2.msra.mxu0 0.0
  %88 = vmatprep.subr.mxu0 0.0
  %89 = vmatpush2.msra.mxu0 0.0
  %90 = vmatprep.subr.mxu0 0.0
  %91 = vmatpush2.msra.mxu0 0.0
  %92 = vmatprep.subr.mxu0 0.0
  %93 = vmatpush2.msra.mxu0 0.0
  %94 = vmatprep.subr.mxu0 0.0
  %95 = vmatpush2.msra.mxu0 0.0
  %96 = vmatprep.subr.mxu0 0.0
  %97 = vmatpush2.msra.mxu0 0.0
  %98 = vmatprep.mubr.f32.mxu0 0.0
  %99 = vmatmul.mubr.f32.gmra.mxu0 %v32
  %v100 = vpop.f32.mrf.mxu0
  %v101 = vadd.f32 %v28, %v100
  %v102 = vpop.f32.mrf.mxu0
  %103 = vdwg.mxu0
  %v104 = vld [vmem:[%s2] sm:$0xff]
  %v105 = vld [vmem:[%s2 + $0x8] sm:$0xff]
  %v106 = vld [vmem:[%s2 + $0x10] sm:$0xff]
  %v107 = vld [vmem:[%s2 + $0x18] sm:$0xff]
  %vm108 = vcmask 261120
  %v110 = vsel %vm108, 0.0, 0
  %112 = vmatprep.subr.mxu0 0.0
  %113 = vmatpush1.msra.mxu0 0.0
  %114 = vmatprep.subr.mxu0 0.0
  %115 = vmatpush1.msra.mxu0 0.0
  %116 = vmatprep.subr.mxu0 0.0
  %117 = vmatpush1.msra.mxu0 0.0
  %118 = vmatprep.subr.mxu0 0.0
  %119 = vmatpush1.msra.mxu0 0.0
  %120 = vmatprep.subr.mxu0 0.0
  %121 = vmatpush1.msra.mxu0 0.0
  %122 = vmatprep.subr.mxu0 0.0
  %123 = vmatpush1.msra.mxu0 0.0
  %124 = vmatprep.subr.mxu0 0.0
  %125 = vmatpush1.msra.mxu0 0.0
  %126 = vmatprep.subr.mxu0 0.0
  %127 = vmatpush1.msra.mxu0 0.0
  %128 = vmatprep.subr.mxu0 0.0
  %129 = vmatpush1.msra.mxu0 0.0
  %130 = vmatprep.subr.mxu0 0.0
  %131 = vmatpush1.msra.mxu0 0.0
  %132 = vmatprep.subr.mxu0 0.0
  %133 = vmatpush1.msra.mxu0 0.0
  %134 = vmatprep.subr.mxu0 0.0
  %135 = vmatpush1.msra.mxu0 0.0
  %136 = vmatprep.subr.mxu0 0.0
  %137 = vmatpush1.msra.mxu0 %v107
  %138 = vmatprep.subr.mxu0 0.0
  %139 = vmatpush1.msra.mxu0 %v106
  %140 = vmatprep.subr.mxu0 0.0
  %141 = vmatpush1.msra.mxu0 %v105
  %142 = vmatprep.subr.mxu0 0.0
  %143 = vmatpush1.msra.mxu0 %v104
  %144 = vmatprep.subr.mxu0 0.0
  %145 = vmatpush2.msra.mxu0 0.0
  %146 = vmatprep.subr.mxu0 0.0
  %147 = vmatpush2.msra.mxu0 0.0
  %148 = vmatprep.subr.mxu0 0.0
  %149 = vmatpush2.msra.mxu0 0.0
  %150 = vmatprep.subr.mxu0 0.0
  %151 = vmatpush2.msra.mxu0 0.0
  %152 = vmatprep.subr.mxu0 0.0
  %153 = vmatpush2.msra.mxu0 0.0
  %154 = vmatprep.subr.mxu0 0.0
  %155 = vmatpush2.msra.mxu0 0.0
  %156 = vmatprep.subr.mxu0 0.0
  %157 = vmatpush2.msra.mxu0 0.0
  %158 = vmatprep.subr.mxu0 0.0
  %159 = vmatpush2.msra.mxu0 0.0
  %160 = vmatprep.subr.mxu0 0.0
  %161 = vmatpush2.msra.mxu0 0.0
  %162 = vmatprep.subr.mxu0 0.0
  %163 = vmatpush2.msra.mxu0 0.0
  %164 = vmatprep.subr.mxu0 0.0
  %165 = vmatpush2.msra.mxu0 0.0
  %166 = vmatprep.subr.mxu0 0.0
  %167 = vmatpush2.msra.mxu0 0.0
  %168 = vmatprep.subr.mxu0 0.0
  %169 = vmatpush2.msra.mxu0 0.0
  %170 = vmatprep.subr.mxu0 0.0
  %171 = vmatpush2.msra.mxu0 0.0
  %172 = vmatprep.subr.mxu0 0.0
  %173 = vmatpush2.msra.mxu0 0.0
  %174 = vmatprep.subr.mxu0 0.0
  %175 = vmatpush2.msra.mxu0 0.0
  %176 = vmatprep.mubr.f32.mxu0 0.0
  %177 = vmatmul.mubr.f32.gmra.mxu0 %v110
  %v178 = vpop.f32.mrf.mxu0
  %v179 = vadd.f32 0.0, %v178
  %v180 = vpop.f32.mrf.mxu0
  %181 = vdwg.mxu0
  %v182 = vadd.f32 %v101, %v179
  %v183 = vxor.u32 %v182, 2147483648
  %v184 = vmul.f32 %v183, 1.442695
  %v185 = vpow.pop %v184
  %v186 = vadd.f32 %v185, 1.0
  %v187 = vrcp.pop %v186
  %v188 = vmul.f32 1.0, %v187
  %v189 = vld [vmem:[%s4] sm:$0x1]
  %v191 = vlaneseq
  %v192 = vshrl.u32 %v191, 7
  %v193 = vsub.s32 0, %v192
  %v194 = vrot.slane %v189, %v193
  %195 = vrot.lane.b32.xlu0 %v194, 64
  %v196 = vpop.permute.xlu0 %195
  %v198 = vadd.f32 %v179, %v196
  %200 = vrot.lane.b32.xlu0 %v198, 64
  %v201 = vpop.permute.xlu0 %200
  %v203 = vmul.f32 %v188, %v201
  %205 = vrot.lane.b32.xlu0 %v203, 64
  %v206 = vpop.permute.xlu0 %205
  %v208 = vadd.f32 %v101, %v206
  %v209 = vtanh.pop %v208
  %v210 = vsub.f32 1.0, %v188
  %212 = vrot.lane.b32.xlu0 %v209, 96
  %v213 = vpop.permute.xlu0 %212
  %v215 = vmul.f32 %v210, %v213
  %v216 = vmul.f32 %v188, 0.0
  %v217 = vadd.f32 %v215, %v216
  %219 = vrot.lane.b32.xlu0 %v217, 96
  %v220 = vpop.permute.xlu0 %219
  %vm222 = vcmask 257024
  %223 = vst.msk [vmem:[%s5] sm:$0xf] %vm222, %v220
  %s224 = scalar_lea.vmem %s0, 4
  %v225 = vld [vmem:[%s224] sm:$0xf]
  %v226 = vld [vmem:[%s1] sm:$0xff]
  %v227 = vld [vmem:[%s1 + $0x8] sm:$0xff]
  %v228 = vld [vmem:[%s3] sm:$0x1]
  %v230 = vlaneseq
  %v231 = vshrl.u32 %v230, 7
  %v232 = vsub.s32 0, %v231
  %v233 = vrot.slane %v228, %v232
  %v236 = vsel %vm30, %v225, 0
  %238 = vmatprep.subr.mxu0 0.0
  %239 = vmatpush1.msra.mxu0 0.0
  %240 = vmatprep.subr.mxu0 0.0
  %241 = vmatpush1.msra.mxu0 0.0
  %242 = vmatprep.subr.mxu0 0.0
  %243 = vmatpush1.msra.mxu0 0.0
  %244 = vmatprep.subr.mxu0 0.0
  %245 = vmatpush1.msra.mxu0 0.0
  %246 = vmatprep.subr.mxu0 0.0
  %247 = vmatpush1.msra.mxu0 0.0
  %248 = vmatprep.subr.mxu0 0.0
  %249 = vmatpush1.msra.mxu0 0.0
  %250 = vmatprep.subr.mxu0 0.0
  %251 = vmatpush1.msra.mxu0 0.0
  %252 = vmatprep.subr.mxu0 0.0
  %253 = vmatpush1.msra.mxu0 0.0
  %254 = vmatprep.subr.mxu0 0.0
  %255 = vmatpush1.msra.mxu0 0.0
  %256 = vmatprep.subr.mxu0 0.0
  %257 = vmatpush1.msra.mxu0 0.0
  %258 = vmatprep.subr.mxu0 0.0
  %259 = vmatpush1.msra.mxu0 0.0
  %260 = vmatprep.subr.mxu0 0.0
  %261 = vmatpush1.msra.mxu0 0.0
  %262 = vmatprep.subr.mxu0 0.0
  %263 = vmatpush1.msra.mxu0 0.0
  %264 = vmatprep.subr.mxu0 0.0
  %265 = vmatpush1.msra.mxu0 0.0
  %266 = vmatprep.subr.mxu0 0.0
  %267 = vmatpush1.msra.mxu0 %v227
  %268 = vmatprep.subr.mxu0 0.0
  %269 = vmatpush1.msra.mxu0 %v226
  %270 = vmatprep.subr.mxu0 0.0
  %271 = vmatpush2.msra.mxu0 0.0
  %272 = vmatprep.subr.mxu0 0.0
  %273 = vmatpush2.msra.mxu0 0.0
  %274 = vmatprep.subr.mxu0 0.0
  %275 = vmatpush2.msra.mxu0 0.0
  %276 = vmatprep.subr.mxu0 0.0
  %277 = vmatpush2.msra.mxu0 0.0
  %278 = vmatprep.subr.mxu0 0.0
  %279 = vmatpush2.msra.mxu0 0.0
  %280 = vmatprep.subr.mxu0 0.0
  %281 = vmatpush2.msra.mxu0 0.0
  %282 = vmatprep.subr.mxu0 0.0
  %283 = vmatpush2.msra.mxu0 0.0
  %284 = vmatprep.subr.mxu0 0.0
  %285 = vmatpush2.msra.mxu0 0.0
  %286 = vmatprep.subr.mxu0 0.0
  %287 = vmatpush2.msra.mxu0 0.0
  %288 = vmatprep.subr.mxu0 0.0
  %289 = vmatpush2.msra.mxu0 0.0
  %290 = vmatprep.subr.mxu0 0.0
  %291 = vmatpush2.msra.mxu0 0.0
  %292 = vmatprep.subr.mxu0 0.0
  %293 = vmatpush2.msra.mxu0 0.0
  %294 = vmatprep.subr.mxu0 0.0
  %295 = vmatpush2.msra.mxu0 0.0
  %296 = vmatprep.subr.mxu0 0.0
  %297 = vmatpush2.msra.mxu0 0.0
  %298 = vmatprep.subr.mxu0 0.0
  %299 = vmatpush2.msra.mxu0 0.0
  %300 = vmatprep.subr.mxu0 0.0
  %301 = vmatpush2.msra.mxu0 0.0
  %302 = vmatprep.mubr.f32.mxu0 0.0
  %303 = vmatmul.mubr.f32.gmra.mxu0 %v236
  %v304 = vpop.f32.mrf.mxu0
  %v305 = vadd.f32 %v233, %v304
  %v306 = vpop.f32.mrf.mxu0
  %307 = vdwg.mxu0
  %v308 = vld [vmem:[%s2] sm:$0xff]
  %v309 = vld [vmem:[%s2 + $0x8] sm:$0xff]
  %v310 = vld [vmem:[%s2 + $0x10] sm:$0xff]
  %v311 = vld [vmem:[%s2 + $0x18] sm:$0xff]
  %v312 = vsel %vm108, %v220, 0
  %314 = vmatprep.subr.mxu0 0.0
  %315 = vmatpush1.msra.mxu0 0.0
  %316 = vmatprep.subr.mxu0 0.0
  %317 = vmatpush1.msra.mxu0 0.0
  %318 = vmatprep.subr.mxu0 0.0
  %319 = vmatpush1.msra.mxu0 0.0
  %320 = vmatprep.subr.mxu0 0.0
  %321 = vmatpush1.msra.mxu0 0.0
  %322 = vmatprep.subr.mxu0 0.0
  %323 = vmatpush1.msra.mxu0 0.0
  %324 = vmatprep.subr.mxu0 0.0
  %325 = vmatpush1.msra.mxu0 0.0
  %326 = vmatprep.subr.mxu0 0.0
  %327 = vmatpush1.msra.mxu0 0.0
  %328 = vmatprep.subr.mxu0 0.0
  %329 = vmatpush1.msra.mxu0 0.0
  %330 = vmatprep.subr.mxu0 0.0
  %331 = vmatpush1.msra.mxu0 0.0
  %332 = vmatprep.subr.mxu0 0.0
  %333 = vmatpush1.msra.mxu0 0.0
  %334 = vmatprep.subr.mxu0 0.0
  %335 = vmatpush1.msra.mxu0 0.0
  %336 = vmatprep.subr.mxu0 0.0
  %337 = vmatpush1.msra.mxu0 0.0
  %338 = vmatprep.subr.mxu0 0.0
  %339 = vmatpush1.msra.mxu0 %v311
  %340 = vmatprep.subr.mxu0 0.0
  %341 = vmatpush1.msra.mxu0 %v310
  %342 = vmatprep.subr.mxu0 0.0
  %343 = vmatpush1.msra.mxu0 %v309
  %344 = vmatprep.subr.mxu0 0.0
  %345 = vmatpush1.msra.mxu0 %v308
  %346 = vmatprep.subr.mxu0 0.0
  %347 = vmatpush2.msra.mxu0 0.0
  %348 = vmatprep.subr.mxu0 0.0
  %349 = vmatpush2.msra.mxu0 0.0
  %350 = vmatprep.subr.mxu0 0.0
  %351 = vmatpush2.msra.mxu0 0.0
  %352 = vmatprep.subr.mxu0 0.0
  %353 = vmatpush2.msra.mxu0 0.0
  %354 = vmatprep.subr.mxu0 0.0
  %355 = vmatpush2.msra.mxu0 0.0
  %356 = vmatprep.subr.mxu0 0.0
  %357 = vmatpush2.msra.mxu0 0.0
  %358 = vmatprep.subr.mxu0 0.0
  %359 = vmatpush2.msra.mxu0 0.0
  %360 = vmatprep.subr.mxu0 0.0
  %361 = vmatpush2.msra.mxu0 0.0
  %362 = vmatprep.subr.mxu0 0.0
  %363 = vmatpush2.msra.mxu0 0.0
  %364 = vmatprep.subr.mxu0 0.0
  %365 = vmatpush2.msra.mxu0 0.0
  %366 = vmatprep.subr.mxu0 0.0
  %367 = vmatpush2.msra.mxu0 0.0
  %368 = vmatprep.subr.mxu0 0.0
  %369 = vmatpush2.msra.mxu0 0.0
  %370 = vmatprep.subr.mxu0 0.0
  %371 = vmatpush2.msra.mxu0 0.0
  %372 = vmatprep.subr.mxu0 0.0
  %373 = vmatpush2.msra.mxu0 0.0
  %374 = vmatprep.subr.mxu0 0.0
  %375 = vmatpush2.msra.mxu0 0.0
  %376 = vmatprep.subr.mxu0 0.0
  %377 = vmatpush2.msra.mxu0 0.0
  %378 = vmatprep.mubr.f32.mxu0 0.0
  %379 = vmatmul.mubr.f32.gmra.mxu0 %v312
  %v380 = vpop.f32.mrf.mxu0
  %v381 = vadd.f32 0.0, %v380
  %v382 = vpop.f32.mrf.mxu0
  %383 = vdwg.mxu0
  %v384 = vadd.f32 %v305, %v381
  %v385 = vxor.u32 %v384, 2147483648
  %v386 = vmul.f32 %v385, 1.442695
  %v387 = vpow.pop %v386
  %v388 = vadd.f32 %v387, 1.0
  %v389 = vrcp.pop %v388
  %v390 = vmul.f32 1.0, %v389
  %v391 = vld [vmem:[%s4] sm:$0x1]
  %v393 = vlaneseq
  %v394 = vshrl.u32 %v393, 7
  %v395 = vsub.s32 0, %v394
  %v396 = vrot.slane %v391, %v395
  %397 = vrot.lane.b32.xlu0 %v396, 64
  %v398 = vpop.permute.xlu0 %397
  %v400 = vadd.f32 %v381, %v398
  %402 = vrot.lane.b32.xlu0 %v400, 64
  %v403 = vpop.permute.xlu0 %402
  %v405 = vmul.f32 %v390, %v403
  %407 = vrot.lane.b32.xlu0 %v405, 64
  %v408 = vpop.permute.xlu0 %407
  %v410 = vadd.f32 %v305, %v408
  %v411 = vtanh.pop %v410
  %v412 = vsub.f32 1.0, %v390
  %414 = vrot.lane.b32.xlu0 %v411, 96
  %v415 = vpop.permute.xlu0 %414
  %v417 = vmul.f32 %v412, %v415
  %v418 = vmul.f32 %v390, %v217
  %v419 = vadd.f32 %v417, %v418
  %421 = vrot.lane.b32.xlu0 %v419, 96
  %v422 = vpop.permute.xlu0 %421
  %s424 = scalar_lea.vmem %s5, 4
  %425 = vst.msk [vmem:[%s424] sm:$0xf] %vm222, %v422
  %s426 = scalar_lea.vmem %s0, 8
  %v427 = vld [vmem:[%s426] sm:$0xf]
  %v428 = vld [vmem:[%s1] sm:$0xff]
  %v429 = vld [vmem:[%s1 + $0x8] sm:$0xff]
  %v430 = vld [vmem:[%s3] sm:$0x1]
  %v432 = vlaneseq
  %v433 = vshrl.u32 %v432, 7
  %v434 = vsub.s32 0, %v433
  %v435 = vrot.slane %v430, %v434
  %v438 = vsel %vm30, %v427, 0
  %440 = vmatprep.subr.mxu0 0.0
  %441 = vmatpush1.msra.mxu0 0.0
  %442 = vmatprep.subr.mxu0 0.0
  %443 = vmatpush1.msra.mxu0 0.0
  %444 = vmatprep.subr.mxu0 0.0
  %445 = vmatpush1.msra.mxu0 0.0
  %446 = vmatprep.subr.mxu0 0.0
  %447 = vmatpush1.msra.mxu0 0.0
  %448 = vmatprep.subr.mxu0 0.0
  %449 = vmatpush1.msra.mxu0 0.0
  %450 = vmatprep.subr.mxu0 0.0
  %451 = vmatpush1.msra.mxu0 0.0
  %452 = vmatprep.subr.mxu0 0.0
  %453 = vmatpush1.msra.mxu0 0.0
  %454 = vmatprep.subr.mxu0 0.0
  %455 = vmatpush1.msra.mxu0 0.0
  %456 = vmatprep.subr.mxu0 0.0
  %457 = vmatpush1.msra.mxu0 0.0
  %458 = vmatprep.subr.mxu0 0.0
  %459 = vmatpush1.msra.mxu0 0.0
  %460 = vmatprep.subr.mxu0 0.0
  %461 = vmatpush1.msra.mxu0 0.0
  %462 = vmatprep.subr.mxu0 0.0
  %463 = vmatpush1.msra.mxu0 0.0
  %464 = vmatprep.subr.mxu0 0.0
  %465 = vmatpush1.msra.mxu0 0.0
  %466 = vmatprep.subr.mxu0 0.0
  %467 = vmatpush1.msra.mxu0 0.0
  %468 = vmatprep.subr.mxu0 0.0
  %469 = vmatpush1.msra.mxu0 %v429
  %470 = vmatprep.subr.mxu0 0.0
  %471 = vmatpush1.msra.mxu0 %v428
  %472 = vmatprep.subr.mxu0 0.0
  %473 = vmatpush2.msra.mxu0 0.0
  %474 = vmatprep.subr.mxu0 0.0
  %475 = vmatpush2.msra.mxu0 0.0
  %476 = vmatprep.subr.mxu0 0.0
  %477 = vmatpush2.msra.mxu0 0.0
  %478 = vmatprep.subr.mxu0 0.0
  %479 = vmatpush2.msra.mxu0 0.0
  %480 = vmatprep.subr.mxu0 0.0
  %481 = vmatpush2.msra.mxu0 0.0
  %482 = vmatprep.subr.mxu0 0.0
  %483 = vmatpush2.msra.mxu0 0.0
  %484 = vmatprep.subr.mxu0 0.0
  %485 = vmatpush2.msra.mxu0 0.0
  %486 = vmatprep.subr.mxu0 0.0
  %487 = vmatpush2.msra.mxu0 0.0
  %488 = vmatprep.subr.mxu0 0.0
  %489 = vmatpush2.msra.mxu0 0.0
  %490 = vmatprep.subr.mxu0 0.0
  %491 = vmatpush2.msra.mxu0 0.0
  %492 = vmatprep.subr.mxu0 0.0
  %493 = vmatpush2.msra.mxu0 0.0
  %494 = vmatprep.subr.mxu0 0.0
  %495 = vmatpush2.msra.mxu0 0.0
  %496 = vmatprep.subr.mxu0 0.0
  %497 = vmatpush2.msra.mxu0 0.0
  %498 = vmatprep.subr.mxu0 0.0
  %499 = vmatpush2.msra.mxu0 0.0
  %500 = vmatprep.subr.mxu0 0.0
  %501 = vmatpush2.msra.mxu0 0.0
  %502 = vmatprep.subr.mxu0 0.0
  %503 = vmatpush2.msra.mxu0 0.0
  %504 = vmatprep.mubr.f32.mxu0 0.0
  %505 = vmatmul.mubr.f32.gmra.mxu0 %v438
  %v506 = vpop.f32.mrf.mxu0
  %v507 = vadd.f32 %v435, %v506
  %v508 = vpop.f32.mrf.mxu0
  %509 = vdwg.mxu0
  %v510 = vld [vmem:[%s2] sm:$0xff]
  %v511 = vld [vmem:[%s2 + $0x8] sm:$0xff]
  %v512 = vld [vmem:[%s2 + $0x10] sm:$0xff]
  %v513 = vld [vmem:[%s2 + $0x18] sm:$0xff]
  %v514 = vsel %vm108, %v422, 0
  %516 = vmatprep.subr.mxu0 0.0
  %517 = vmatpush1.msra.mxu0 0.0
  %518 = vmatprep.subr.mxu0 0.0
  %519 = vmatpush1.msra.mxu0 0.0
  %520 = vmatprep.subr.mxu0 0.0
  %521 = vmatpush1.msra.mxu0 0.0
  %522 = vmatprep.subr.mxu0 0.0
  %523 = vmatpush1.msra.mxu0 0.0
  %524 = vmatprep.subr.mxu0 0.0
  %525 = vmatpush1.msra.mxu0 0.0
  %526 = vmatprep.subr.mxu0 0.0
  %527 = vmatpush1.msra.mxu0 0.0
  %528 = vmatprep.subr.mxu0 0.0
  %529 = vmatpush1.msra.mxu0 0.0
  %530 = vmatprep.subr.mxu0 0.0
  %531 = vmatpush1.msra.mxu0 0.0
  %532 = vmatprep.subr.mxu0 0.0
  %533 = vmatpush1.msra.mxu0 0.0
  %534 = vmatprep.subr.mxu0 0.0
  %535 = vmatpush1.msra.mxu0 0.0
  %536 = vmatprep.subr.mxu0 0.0
  %537 = vmatpush1.msra.mxu0 0.0
  %538 = vmatprep.subr.mxu0 0.0
  %539 = vmatpush1.msra.mxu0 0.0
  %540 = vmatprep.subr.mxu0 0.0
  %541 = vmatpush1.msra.mxu0 %v513
  %542 = vmatprep.subr.mxu0 0.0
  %543 = vmatpush1.msra.mxu0 %v512
  %544 = vmatprep.subr.mxu0 0.0
  %545 = vmatpush1.msra.mxu0 %v511
  %546 = vmatprep.subr.mxu0 0.0
  %547 = vmatpush1.msra.mxu0 %v510
  %548 = vmatprep.subr.mxu0 0.0
  %549 = vmatpush2.msra.mxu0 0.0
  %550 = vmatprep.subr.mxu0 0.0
  %551 = vmatpush2.msra.mxu0 0.0
  %552 = vmatprep.subr.mxu0 0.0
  %553 = vmatpush2.msra.mxu0 0.0
  %554 = vmatprep.subr.mxu0 0.0
  %555 = vmatpush2.msra.mxu0 0.0
  %556 = vmatprep.subr.mxu0 0.0
  %557 = vmatpush2.msra.mxu0 0.0
  %558 = vmatprep.subr.mxu0 0.0
  %559 = vmatpush2.msra.mxu0 0.0
  %560 = vmatprep.subr.mxu0 0.0
  %561 = vmatpush2.msra.mxu0 0.0
  %562 = vmatprep.subr.mxu0 0.0
  %563 = vmatpush2.msra.mxu0 0.0
  %564 = vmatprep.subr.mxu0 0.0
  %565 = vmatpush2.msra.mxu0 0.0
  %566 = vmatprep.subr.mxu0 0.0
  %567 = vmatpush2.msra.mxu0 0.0
  %568 = vmatprep.subr.mxu0 0.0
  %569 = vmatpush2.msra.mxu0 0.0
  %570 = vmatprep.subr.mxu0 0.0
  %571 = vmatpush2.msra.mxu0 0.0
  %572 = vmatprep.subr.mxu0 0.0
  %573 = vmatpush2.msra.mxu0 0.0
  %574 = vmatprep.subr.mxu0 0.0
  %575 = vmatpush2.msra.mxu0 0.0
  %576 = vmatprep.subr.mxu0 0.0
  %577 = vmatpush2.msra.mxu0 0.0
  %578 = vmatprep.subr.mxu0 0.0
  %579 = vmatpush2.msra.mxu0 0.0
  %580 = vmatprep.mubr.f32.mxu0 0.0
  %581 = vmatmul.mubr.f32.gmra.mxu0 %v514
  %v582 = vpop.f32.mrf.mxu0
  %v583 = vadd.f32 0.0, %v582
  %v584 = vpop.f32.mrf.mxu0
  %585 = vdwg.mxu0
  %v586 = vadd.f32 %v507, %v583
  %v587 = vxor.u32 %v586, 2147483648
  %v588 = vmul.f32 %v587, 1.442695
  %v589 = vpow.pop %v588
  %v590 = vadd.f32 %v589, 1.0
  %v591 = vrcp.pop %v590
  %v592 = vmul.f32 1.0, %v591
  %v593 = vld [vmem:[%s4] sm:$0x1]
  %v595 = vlaneseq
  %v596 = vshrl.u32 %v595, 7
  %v597 = vsub.s32 0, %v596
  %v598 = vrot.slane %v593, %v597
  %599 = vrot.lane.b32.xlu0 %v598, 64
  %v600 = vpop.permute.xlu0 %599
  %v602 = vadd.f32 %v583, %v600
  %604 = vrot.lane.b32.xlu0 %v602, 64
  %v605 = vpop.permute.xlu0 %604
  %v607 = vmul.f32 %v592, %v605
  %609 = vrot.lane.b32.xlu0 %v607, 64
  %v610 = vpop.permute.xlu0 %609
  %v612 = vadd.f32 %v507, %v610
  %v613 = vtanh.pop %v612
  %v614 = vsub.f32 1.0, %v592
  %616 = vrot.lane.b32.xlu0 %v613, 96
  %v617 = vpop.permute.xlu0 %616
  %v619 = vmul.f32 %v614, %v617
  %v620 = vmul.f32 %v592, %v419
  %v621 = vadd.f32 %v619, %v620
  %623 = vrot.lane.b32.xlu0 %v621, 96
  %v624 = vpop.permute.xlu0 %623
  %s626 = scalar_lea.vmem %s5, 8
  %627 = vst.msk [vmem:[%s626] sm:$0xf] %vm222, %v624
  %s628 = scalar_lea.vmem %s0, 12
  %v629 = vld [vmem:[%s628] sm:$0xf]
  %v630 = vld [vmem:[%s1] sm:$0xff]
  %v631 = vld [vmem:[%s1 + $0x8] sm:$0xff]
  %v632 = vld [vmem:[%s3] sm:$0x1]
  %v634 = vlaneseq
  %v635 = vshrl.u32 %v634, 7
  %v636 = vsub.s32 0, %v635
  %v637 = vrot.slane %v632, %v636
  %v640 = vsel %vm30, %v629, 0
  %642 = vmatprep.subr.mxu0 0.0
  %643 = vmatpush1.msra.mxu0 0.0
  %644 = vmatprep.subr.mxu0 0.0
  %645 = vmatpush1.msra.mxu0 0.0
  %646 = vmatprep.subr.mxu0 0.0
  %647 = vmatpush1.msra.mxu0 0.0
  %648 = vmatprep.subr.mxu0 0.0
  %649 = vmatpush1.msra.mxu0 0.0
  %650 = vmatprep.subr.mxu0 0.0
  %651 = vmatpush1.msra.mxu0 0.0
  %652 = vmatprep.subr.mxu0 0.0
  %653 = vmatpush1.msra.mxu0 0.0
  %654 = vmatprep.subr.mxu0 0.0
  %655 = vmatpush1.msra.mxu0 0.0
  %656 = vmatprep.subr.mxu0 0.0
  %657 = vmatpush1.msra.mxu0 0.0
  %658 = vmatprep.subr.mxu0 0.0
  %659 = vmatpush1.msra.mxu0 0.0
  %660 = vmatprep.subr.mxu0 0.0
  %661 = vmatpush1.msra.mxu0 0.0
  %662 = vmatprep.subr.mxu0 0.0
  %663 = vmatpush1.msra.mxu0 0.0
  %664 = vmatprep.subr.mxu0 0.0
  %665 = vmatpush1.msra.mxu0 0.0
  %666 = vmatprep.subr.mxu0 0.0
  %667 = vmatpush1.msra.mxu0 0.0
  %668 = vmatprep.subr.mxu0 0.0
  %669 = vmatpush1.msra.mxu0 0.0
  %670 = vmatprep.subr.mxu0 0.0
  %671 = vmatpush1.msra.mxu0 %v631
  %672 = vmatprep.subr.mxu0 0.0
  %673 = vmatpush1.msra.mxu0 %v630
  %674 = vmatprep.subr.mxu0 0.0
  %675 = vmatpush2.msra.mxu0 0.0
  %676 = vmatprep.subr.mxu0 0.0
  %677 = vmatpush2.msra.mxu0 0.0
  %678 = vmatprep.subr.mxu0 0.0
  %679 = vmatpush2.msra.mxu0 0.0
  %680 = vmatprep.subr.mxu0 0.0
  %681 = vmatpush2.msra.mxu0 0.0
  %682 = vmatprep.subr.mxu0 0.0
  %683 = vmatpush2.msra.mxu0 0.0
  %684 = vmatprep.subr.mxu0 0.0
  %685 = vmatpush2.msra.mxu0 0.0
  %686 = vmatprep.subr.mxu0 0.0
  %687 = vmatpush2.msra.mxu0 0.0
  %688 = vmatprep.subr.mxu0 0.0
  %689 = vmatpush2.msra.mxu0 0.0
  %690 = vmatprep.subr.mxu0 0.0
  %691 = vmatpush2.msra.mxu0 0.0
  %692 = vmatprep.subr.mxu0 0.0
  %693 = vmatpush2.msra.mxu0 0.0
  %694 = vmatprep.subr.mxu0 0.0
  %695 = vmatpush2.msra.mxu0 0.0
  %696 = vmatprep.subr.mxu0 0.0
  %697 = vmatpush2.msra.mxu0 0.0
  %698 = vmatprep.subr.mxu0 0.0
  %699 = vmatpush2.msra.mxu0 0.0
  %700 = vmatprep.subr.mxu0 0.0
  %701 = vmatpush2.msra.mxu0 0.0
  %702 = vmatprep.subr.mxu0 0.0
  %703 = vmatpush2.msra.mxu0 0.0
  %704 = vmatprep.subr.mxu0 0.0
  %705 = vmatpush2.msra.mxu0 0.0
  %706 = vmatprep.mubr.f32.mxu0 0.0
  %707 = vmatmul.mubr.f32.gmra.mxu0 %v640
  %v708 = vpop.f32.mrf.mxu0
  %v709 = vadd.f32 %v637, %v708
  %v710 = vpop.f32.mrf.mxu0
  %711 = vdwg.mxu0
  %v712 = vld [vmem:[%s2] sm:$0xff]
  %v713 = vld [vmem:[%s2 + $0x8] sm:$0xff]
  %v714 = vld [vmem:[%s2 + $0x10] sm:$0xff]
  %v715 = vld [vmem:[%s2 + $0x18] sm:$0xff]
  %v716 = vsel %vm108, %v624, 0
  %718 = vmatprep.subr.mxu0 0.0
  %719 = vmatpush1.msra.mxu0 0.0
  %720 = vmatprep.subr.mxu0 0.0
  %721 = vmatpush1.msra.mxu0 0.0
  %722 = vmatprep.subr.mxu0 0.0
  %723 = vmatpush1.msra.mxu0 0.0
  %724 = vmatprep.subr.mxu0 0.0
  %725 = vmatpush1.msra.mxu0 0.0
  %726 = vmatprep.subr.mxu0 0.0
  %727 = vmatpush1.msra.mxu0 0.0
  %728 = vmatprep.subr.mxu0 0.0
  %729 = vmatpush1.msra.mxu0 0.0
  %730 = vmatprep.subr.mxu0 0.0
  %731 = vmatpush1.msra.mxu0 0.0
  %732 = vmatprep.subr.mxu0 0.0
  %733 = vmatpush1.msra.mxu0 0.0
  %734 = vmatprep.subr.mxu0 0.0
  %735 = vmatpush1.msra.mxu0 0.0
  %736 = vmatprep.subr.mxu0 0.0
  %737 = vmatpush1.msra.mxu0 0.0
  %738 = vmatprep.subr.mxu0 0.0
  %739 = vmatpush1.msra.mxu0 0.0
  %740 = vmatprep.subr.mxu0 0.0
  %741 = vmatpush1.msra.mxu0 0.0
  %742 = vmatprep.subr.mxu0 0.0
  %743 = vmatpush1.msra.mxu0 %v715
  %744 = vmatprep.subr.mxu0 0.0
  %745 = vmatpush1.msra.mxu0 %v714
  %746 = vmatprep.subr.mxu0 0.0
  %747 = vmatpush1.msra.mxu0 %v713
  %748 = vmatprep.subr.mxu0 0.0
  %749 = vmatpush1.msra.mxu0 %v712
  %750 = vmatprep.subr.mxu0 0.0
  %751 = vmatpush2.msra.mxu0 0.0
  %752 = vmatprep.subr.mxu0 0.0
  %753 = vmatpush2.msra.mxu0 0.0
  %754 = vmatprep.subr.mxu0 0.0
  %755 = vmatpush2.msra.mxu0 0.0
  %756 = vmatprep.subr.mxu0 0.0
  %757 = vmatpush2.msra.mxu0 0.0
  %758 = vmatprep.subr.mxu0 0.0
  %759 = vmatpush2.msra.mxu0 0.0
  %760 = vmatprep.subr.mxu0 0.0
  %761 = vmatpush2.msra.mxu0 0.0
  %762 = vmatprep.subr.mxu0 0.0
  %763 = vmatpush2.msra.mxu0 0.0
  %764 = vmatprep.subr.mxu0 0.0
  %765 = vmatpush2.msra.mxu0 0.0
  %766 = vmatprep.subr.mxu0 0.0
  %767 = vmatpush2.msra.mxu0 0.0
  %768 = vmatprep.subr.mxu0 0.0
  %769 = vmatpush2.msra.mxu0 0.0
  %770 = vmatprep.subr.mxu0 0.0
  %771 = vmatpush2.msra.mxu0 0.0
  %772 = vmatprep.subr.mxu0 0.0
  %773 = vmatpush2.msra.mxu0 0.0
  %774 = vmatprep.subr.mxu0 0.0
  %775 = vmatpush2.msra.mxu0 0.0
  %776 = vmatprep.subr.mxu0 0.0
  %777 = vmatpush2.msra.mxu0 0.0
  %778 = vmatprep.subr.mxu0 0.0
  %779 = vmatpush2.msra.mxu0 0.0
  %780 = vmatprep.subr.mxu0 0.0
  %781 = vmatpush2.msra.mxu0 0.0
  %782 = vmatprep.mubr.f32.mxu0 0.0
  %783 = vmatmul.mubr.f32.gmra.mxu0 %v716
  %v784 = vpop.f32.mrf.mxu0
  %v785 = vadd.f32 0.0, %v784
  %v786 = vpop.f32.mrf.mxu0
  %787 = vdwg.mxu0
  %v788 = vadd.f32 %v709, %v785
  %v789 = vxor.u32 %v788, 2147483648
  %v790 = vmul.f32 %v789, 1.442695
  %v791 = vpow.pop %v790
  %v792 = vadd.f32 %v791, 1.0
  %v793 = vrcp.pop %v792
  %v794 = vmul.f32 1.0, %v793
  %v795 = vld [vmem:[%s4] sm:$0x1]
  %v797 = vlaneseq
  %v798 = vshrl.u32 %v797, 7
  %v799 = vsub.s32 0, %v798
  %v800 = vrot.slane %v795, %v799
  %801 = vrot.lane.b32.xlu0 %v800, 64
  %v802 = vpop.permute.xlu0 %801
  %v804 = vadd.f32 %v785, %v802
  %806 = vrot.lane.b32.xlu0 %v804, 64
  %v807 = vpop.permute.xlu0 %806
  %v809 = vmul.f32 %v794, %v807
  %811 = vrot.lane.b32.xlu0 %v809, 64
  %v812 = vpop.permute.xlu0 %811
  %v814 = vadd.f32 %v709, %v812
  %v815 = vtanh.pop %v814
  %v816 = vsub.f32 1.0, %v794
  %818 = vrot.lane.b32.xlu0 %v815, 96
  %v819 = vpop.permute.xlu0 %818
  %v821 = vmul.f32 %v816, %v819
  %v822 = vmul.f32 %v794, %v621
  %v823 = vadd.f32 %v821, %v822
  %825 = vrot.lane.b32.xlu0 %v823, 96
  %v826 = vpop.permute.xlu0 %825
  %s828 = scalar_lea.vmem %s5, 12
  %829 = vst.msk [vmem:[%s828] sm:$0xf] %vm222, %v826
  %s830 = scalar_lea.vmem %s0, 16
  %v831 = vld [vmem:[%s830] sm:$0xf]
  %v832 = vld [vmem:[%s1] sm:$0xff]
  %v833 = vld [vmem:[%s1 + $0x8] sm:$0xff]
  %v834 = vld [vmem:[%s3] sm:$0x1]
  %v836 = vlaneseq
  %v837 = vshrl.u32 %v836, 7
  %v838 = vsub.s32 0, %v837
  %v839 = vrot.slane %v834, %v838
  %v842 = vsel %vm30, %v831, 0
  %844 = vmatprep.subr.mxu0 0.0
  %845 = vmatpush1.msra.mxu0 0.0
  %846 = vmatprep.subr.mxu0 0.0
  %847 = vmatpush1.msra.mxu0 0.0
  %848 = vmatprep.subr.mxu0 0.0
  %849 = vmatpush1.msra.mxu0 0.0
  %850 = vmatprep.subr.mxu0 0.0
  %851 = vmatpush1.msra.mxu0 0.0
  %852 = vmatprep.subr.mxu0 0.0
  %853 = vmatpush1.msra.mxu0 0.0
  %854 = vmatprep.subr.mxu0 0.0
  %855 = vmatpush1.msra.mxu0 0.0
  %856 = vmatprep.subr.mxu0 0.0
  %857 = vmatpush1.msra.mxu0 0.0
  %858 = vmatprep.subr.mxu0 0.0
  %859 = vmatpush1.msra.mxu0 0.0
  %860 = vmatprep.subr.mxu0 0.0
  %861 = vmatpush1.msra.mxu0 0.0
  %862 = vmatprep.subr.mxu0 0.0
  %863 = vmatpush1.msra.mxu0 0.0
  %864 = vmatprep.subr.mxu0 0.0
  %865 = vmatpush1.msra.mxu0 0.0
  %866 = vmatprep.subr.mxu0 0.0
  %867 = vmatpush1.msra.mxu0 0.0
  %868 = vmatprep.subr.mxu0 0.0
  %869 = vmatpush1.msra.mxu0 0.0
  %870 = vmatprep.subr.mxu0 0.0
  %871 = vmatpush1.msra.mxu0 0.0
  %872 = vmatprep.subr.mxu0 0.0
  %873 = vmatpush1.msra.mxu0 %v833
  %874 = vmatprep.subr.mxu0 0.0
  %875 = vmatpush1.msra.mxu0 %v832
  %876 = vmatprep.subr.mxu0 0.0
  %877 = vmatpush2.msra.mxu0 0.0
  %878 = vmatprep.subr.mxu0 0.0
  %879 = vmatpush2.msra.mxu0 0.0
  %880 = vmatprep.subr.mxu0 0.0
  %881 = vmatpush2.msra.mxu0 0.0
  %882 = vmatprep.subr.mxu0 0.0
  %883 = vmatpush2.msra.mxu0 0.0
  %884 = vmatprep.subr.mxu0 0.0
  %885 = vmatpush2.msra.mxu0 0.0
  %886 = vmatprep.subr.mxu0 0.0
  %887 = vmatpush2.msra.mxu0 0.0
  %888 = vmatprep.subr.mxu0 0.0
  %889 = vmatpush2.msra.mxu0 0.0
  %890 = vmatprep.subr.mxu0 0.0
  %891 = vmatpush2.msra.mxu0 0.0
  %892 = vmatprep.subr.mxu0 0.0
  %893 = vmatpush2.msra.mxu0 0.0
  %894 = vmatprep.subr.mxu0 0.0
  %895 = vmatpush2.msra.mxu0 0.0
  %896 = vmatprep.subr.mxu0 0.0
  %897 = vmatpush2.msra.mxu0 0.0
  %898 = vmatprep.subr.mxu0 0.0
  %899 = vmatpush2.msra.mxu0 0.0
  %900 = vmatprep.subr.mxu0 0.0
  %901 = vmatpush2.msra.mxu0 0.0
  %902 = vmatprep.subr.mxu0 0.0
  %903 = vmatpush2.msra.mxu0 0.0
  %904 = vmatprep.subr.mxu0 0.0
  %905 = vmatpush2.msra.mxu0 0.0
  %906 = vmatprep.subr.mxu0 0.0
  %907 = vmatpush2.msra.mxu0 0.0
  %908 = vmatprep.mubr.f32.mxu0 0.0
  %909 = vmatmul.mubr.f32.gmra.mxu0 %v842
  %v910 = vpop.f32.mrf.mxu0
  %v911 = vadd.f32 %v839, %v910
  %v912 = vpop.f32.mrf.mxu0
  %913 = vdwg.mxu0
  %v914 = vld [vmem:[%s2] sm:$0xff]
  %v915 = vld [vmem:[%s2 + $0x8] sm:$0xff]
  %v916 = vld [vmem:[%s2 + $0x10] sm:$0xff]
  %v917 = vld [vmem:[%s2 + $0x18] sm:$0xff]
  %v918 = vsel %vm108, %v826, 0
  %920 = vmatprep.subr.mxu0 0.0
  %921 = vmatpush1.msra.mxu0 0.0
  %922 = vmatprep.subr.mxu0 0.0
  %923 = vmatpush1.msra.mxu0 0.0
  %924 = vmatprep.subr.mxu0 0.0
  %925 = vmatpush1.msra.mxu0 0.0
  %926 = vmatprep.subr.mxu0 0.0
  %927 = vmatpush1.msra.mxu0 0.0
  %928 = vmatprep.subr.mxu0 0.0
  %929 = vmatpush1.msra.mxu0 0.0
  %930 = vmatprep.subr.mxu0 0.0
  %931 = vmatpush1.msra.mxu0 0.0
  %932 = vmatprep.subr.mxu0 0.0
  %933 = vmatpush1.msra.mxu0 0.0
  %934 = vmatprep.subr.mxu0 0.0
  %935 = vmatpush1.msra.mxu0 0.0
  %936 = vmatprep.subr.mxu0 0.0
  %937 = vmatpush1.msra.mxu0 0.0
  %938 = vmatprep.subr.mxu0 0.0
  %939 = vmatpush1.msra.mxu0 0.0
  %940 = vmatprep.subr.mxu0 0.0
  %941 = vmatpush1.msra.mxu0 0.0
  %942 = vmatprep.subr.mxu0 0.0
  %943 = vmatpush1.msra.mxu0 0.0
  %944 = vmatprep.subr.mxu0 0.0
  %945 = vmatpush1.msra.mxu0 %v917
  %946 = vmatprep.subr.mxu0 0.0
  %947 = vmatpush1.msra.mxu0 %v916
  %948 = vmatprep.subr.mxu0 0.0
  %949 = vmatpush1.msra.mxu0 %v915
  %950 = vmatprep.subr.mxu0 0.0
  %951 = vmatpush1.msra.mxu0 %v914
  %952 = vmatprep.subr.mxu0 0.0
  %953 = vmatpush2.msra.mxu0 0.0
  %954 = vmatprep.subr.mxu0 0.0
  %955 = vmatpush2.msra.mxu0 0.0
  %956 = vmatprep.subr.mxu0 0.0
  %957 = vmatpush2.msra.mxu0 0.0
  %958 = vmatprep.subr.mxu0 0.0
  %959 = vmatpush2.msra.mxu0 0.0
  %960 = vmatprep.subr.mxu0 0.0
  %961 = vmatpush2.msra.mxu0 0.0
  %962 = vmatprep.subr.mxu0 0.0
  %963 = vmatpush2.msra.mxu0 0.0
  %964 = vmatprep.subr.mxu0 0.0
  %965 = vmatpush2.msra.mxu0 0.0
  %966 = vmatprep.subr.mxu0 0.0
  %967 = vmatpush2.msra.mxu0 0.0
  %968 = vmatprep.subr.mxu0 0.0
  %969 = vmatpush2.msra.mxu0 0.0
  %970 = vmatprep.subr.mxu0 0.0
  %971 = vmatpush2.msra.mxu0 0.0
  %972 = vmatprep.subr.mxu0 0.0
  %973 = vmatpush2.msra.mxu0 0.0
  %974 = vmatprep.subr.mxu0 0.0
  %975 = vmatpush2.msra.mxu0 0.0
  %976 = vmatprep.subr.mxu0 0.0
  %977 = vmatpush2.msra.mxu0 0.0
  %978 = vmatprep.subr.mxu0 0.0
  %979 = vmatpush2.msra.mxu0 0.0
  %980 = vmatprep.subr.mxu0 0.0
  %981 = vmatpush2.msra.mxu0 0.0
  %982 = vmatprep.subr.mxu0 0.0
  %983 = vmatpush2.msra.mxu0 0.0
  %984 = vmatprep.mubr.f32.mxu0 0.0
  %985 = vmatmul.mubr.f32.gmra.mxu0 %v918
  %v986 = vpop.f32.mrf.mxu0
  %v987 = vadd.f32 0.0, %v986
  %v988 = vpop.f32.mrf.mxu0
  %989 = vdwg.mxu0
  %v990 = vadd.f32 %v911, %v987
  %v991 = vxor.u32 %v990, 2147483648
  %v992 = vmul.f32 %v991, 1.442695
  %v993 = vpow.pop %v992
  %v994 = vadd.f32 %v993, 1.0
  %v995 = vrcp.pop %v994
  %v996 = vmul.f32 1.0, %v995
  %v997 = vld [vmem:[%s4] sm:$0x1]
  %v999 = vlaneseq
  %v1000 = vshrl.u32 %v999, 7
  %v1001 = vsub.s32 0, %v1000
  %v1002 = vrot.slane %v997, %v1001
  %1003 = vrot.lane.b32.xlu0 %v1002, 64
  %v1004 = vpop.permute.xlu0 %1003
  %v1006 = vadd.f32 %v987, %v1004
  %1008 = vrot.lane.b32.xlu0 %v1006, 64
  %v1009 = vpop.permute.xlu0 %1008
  %v1011 = vmul.f32 %v996, %v1009
  %1013 = vrot.lane.b32.xlu0 %v1011, 64
  %v1014 = vpop.permute.xlu0 %1013
  %v1016 = vadd.f32 %v911, %v1014
  %v1017 = vtanh.pop %v1016
  %v1018 = vsub.f32 1.0, %v996
  %1020 = vrot.lane.b32.xlu0 %v1017, 96
  %v1021 = vpop.permute.xlu0 %1020
  %v1023 = vmul.f32 %v1018, %v1021
  %v1024 = vmul.f32 %v996, %v823
  %v1025 = vadd.f32 %v1023, %v1024
  %1027 = vrot.lane.b32.xlu0 %v1025, 96
  %v1028 = vpop.permute.xlu0 %1027
  %s1030 = scalar_lea.vmem %s5, 16
  %1031 = vst.msk [vmem:[%s1030] sm:$0xf] %vm222, %v1028
  %s1032 = scalar_lea.vmem %s0, 20
  %v1033 = vld [vmem:[%s1032] sm:$0xf]
  %v1034 = vld [vmem:[%s1] sm:$0xff]
  %v1035 = vld [vmem:[%s1 + $0x8] sm:$0xff]
  %v1036 = vld [vmem:[%s3] sm:$0x1]
  %v1038 = vlaneseq
  %v1039 = vshrl.u32 %v1038, 7
  %v1040 = vsub.s32 0, %v1039
  %v1041 = vrot.slane %v1036, %v1040
  %v1044 = vsel %vm30, %v1033, 0
  %1046 = vmatprep.subr.mxu0 0.0
  %1047 = vmatpush1.msra.mxu0 0.0
  %1048 = vmatprep.subr.mxu0 0.0
  %1049 = vmatpush1.msra.mxu0 0.0
  %1050 = vmatprep.subr.mxu0 0.0
  %1051 = vmatpush1.msra.mxu0 0.0
  %1052 = vmatprep.subr.mxu0 0.0
  %1053 = vmatpush1.msra.mxu0 0.0
  %1054 = vmatprep.subr.mxu0 0.0
  %1055 = vmatpush1.msra.mxu0 0.0
  %1056 = vmatprep.subr.mxu0 0.0
  %1057 = vmatpush1.msra.mxu0 0.0
  %1058 = vmatprep.subr.mxu0 0.0
  %1059 = vmatpush1.msra.mxu0 0.0
  %1060 = vmatprep.subr.mxu0 0.0
  %1061 = vmatpush1.msra.mxu0 0.0
  %1062 = vmatprep.subr.mxu0 0.0
  %1063 = vmatpush1.msra.mxu0 0.0
  %1064 = vmatprep.subr.mxu0 0.0
  %1065 = vmatpush1.msra.mxu0 0.0
  %1066 = vmatprep.subr.mxu0 0.0
  %1067 = vmatpush1.msra.mxu0 0.0
  %1068 = vmatprep.subr.mxu0 0.0
  %1069 = vmatpush1.msra.mxu0 0.0
  %1070 = vmatprep.subr.mxu0 0.0
  %1071 = vmatpush1.msra.mxu0 0.0
  %1072 = vmatprep.subr.mxu0 0.0
  %1073 = vmatpush1.msra.mxu0 0.0
  %1074 = vmatprep.subr.mxu0 0.0
  %1075 = vmatpush1.msra.mxu0 %v1035
  %1076 = vmatprep.subr.mxu0 0.0
  %1077 = vmatpush1.msra.mxu0 %v1034
  %1078 = vmatprep.subr.mxu0 0.0
  %1079 = vmatpush2.msra.mxu0 0.0
  %1080 = vmatprep.subr.mxu0 0.0
  %1081 = vmatpush2.msra.mxu0 0.0
  %1082 = vmatprep.subr.mxu0 0.0
  %1083 = vmatpush2.msra.mxu0 0.0
  %1084 = vmatprep.subr.mxu0 0.0
  %1085 = vmatpush2.msra.mxu0 0.0
  %1086 = vmatprep.subr.mxu0 0.0
  %1087 = vmatpush2.msra.mxu0 0.0
  %1088 = vmatprep.subr.mxu0 0.0
  %1089 = vmatpush2.msra.mxu0 0.0
  %1090 = vmatprep.subr.mxu0 0.0
  %1091 = vmatpush2.msra.mxu0 0.0
  %1092 = vmatprep.subr.mxu0 0.0
  %1093 = vmatpush2.msra.mxu0 0.0
  %1094 = vmatprep.subr.mxu0 0.0
  %1095 = vmatpush2.msra.mxu0 0.0
  %1096 = vmatprep.subr.mxu0 0.0
  %1097 = vmatpush2.msra.mxu0 0.0
  %1098 = vmatprep.subr.mxu0 0.0
  %1099 = vmatpush2.msra.mxu0 0.0
  %1100 = vmatprep.subr.mxu0 0.0
  %1101 = vmatpush2.msra.mxu0 0.0
  %1102 = vmatprep.subr.mxu0 0.0
  %1103 = vmatpush2.msra.mxu0 0.0
  %1104 = vmatprep.subr.mxu0 0.0
  %1105 = vmatpush2.msra.mxu0 0.0
  %1106 = vmatprep.subr.mxu0 0.0
  %1107 = vmatpush2.msra.mxu0 0.0
  %1108 = vmatprep.subr.mxu0 0.0
  %1109 = vmatpush2.msra.mxu0 0.0
  %1110 = vmatprep.mubr.f32.mxu0 0.0
  %1111 = vmatmul.mubr.f32.gmra.mxu0 %v1044
  %v1112 = vpop.f32.mrf.mxu0
  %v1113 = vadd.f32 %v1041, %v1112
  %v1114 = vpop.f32.mrf.mxu0
  %1115 = vdwg.mxu0
  %v1116 = vld [vmem:[%s2] sm:$0xff]
  %v1117 = vld [vmem:[%s2 + $0x8] sm:$0xff]
  %v1118 = vld [vmem:[%s2 + $0x10] sm:$0xff]
  %v1119 = vld [vmem:[%s2 + $0x18] sm:$0xff]
  %v1120 = vsel %vm108, %v1028, 0
  %1122 = vmatprep.subr.mxu0 0.0
  %1123 = vmatpush1.msra.mxu0 0.0
  %1124 = vmatprep.subr.mxu0 0.0
  %1125 = vmatpush1.msra.mxu0 0.0
  %1126 = vmatprep.subr.mxu0 0.0
  %1127 = vmatpush1.msra.mxu0 0.0
  %1128 = vmatprep.subr.mxu0 0.0
  %1129 = vmatpush1.msra.mxu0 0.0
  %1130 = vmatprep.subr.mxu0 0.0
  %1131 = vmatpush1.msra.mxu0 0.0
  %1132 = vmatprep.subr.mxu0 0.0
  %1133 = vmatpush1.msra.mxu0 0.0
  %1134 = vmatprep.subr.mxu0 0.0
  %1135 = vmatpush1.msra.mxu0 0.0
  %1136 = vmatprep.subr.mxu0 0.0
  %1137 = vmatpush1.msra.mxu0 0.0
  %1138 = vmatprep.subr.mxu0 0.0
  %1139 = vmatpush1.msra.mxu0 0.0
  %1140 = vmatprep.subr.mxu0 0.0
  %1141 = vmatpush1.msra.mxu0 0.0
  %1142 = vmatprep.subr.mxu0 0.0
  %1143 = vmatpush1.msra.mxu0 0.0
  %1144 = vmatprep.subr.mxu0 0.0
  %1145 = vmatpush1.msra.mxu0 0.0
  %1146 = vmatprep.subr.mxu0 0.0
  %1147 = vmatpush1.msra.mxu0 %v1119
  %1148 = vmatprep.subr.mxu0 0.0
  %1149 = vmatpush1.msra.mxu0 %v1118
  %1150 = vmatprep.subr.mxu0 0.0
  %1151 = vmatpush1.msra.mxu0 %v1117
  %1152 = vmatprep.subr.mxu0 0.0
  %1153 = vmatpush1.msra.mxu0 %v1116
  %1154 = vmatprep.subr.mxu0 0.0
  %1155 = vmatpush2.msra.mxu0 0.0
  %1156 = vmatprep.subr.mxu0 0.0
  %1157 = vmatpush2.msra.mxu0 0.0
  %1158 = vmatprep.subr.mxu0 0.0
  %1159 = vmatpush2.msra.mxu0 0.0
  %1160 = vmatprep.subr.mxu0 0.0
  %1161 = vmatpush2.msra.mxu0 0.0
  %1162 = vmatprep.subr.mxu0 0.0
  %1163 = vmatpush2.msra.mxu0 0.0
  %1164 = vmatprep.subr.mxu0 0.0
  %1165 = vmatpush2.msra.mxu0 0.0
  %1166 = vmatprep.subr.mxu0 0.0
  %1167 = vmatpush2.msra.mxu0 0.0
  %1168 = vmatprep.subr.mxu0 0.0
  %1169 = vmatpush2.msra.mxu0 0.0
  %1170 = vmatprep.subr.mxu0 0.0
  %1171 = vmatpush2.msra.mxu0 0.0
  %1172 = vmatprep.subr.mxu0 0.0
  %1173 = vmatpush2.msra.mxu0 0.0
  %1174 = vmatprep.subr.mxu0 0.0
  %1175 = vmatpush2.msra.mxu0 0.0
  %1176 = vmatprep.subr.mxu0 0.0
  %1177 = vmatpush2.msra.mxu0 0.0
  %1178 = vmatprep.subr.mxu0 0.0
  %1179 = vmatpush2.msra.mxu0 0.0
  %1180 = vmatprep.subr.mxu0 0.0
  %1181 = vmatpush2.msra.mxu0 0.0
  %1182 = vmatprep.subr.mxu0 0.0
  %1183 = vmatpush2.msra.mxu0 0.0
  %1184 = vmatprep.subr.mxu0 0.0
  %1185 = vmatpush2.msra.mxu0 0.0
  %1186 = vmatprep.mubr.f32.mxu0 0.0
  %1187 = vmatmul.mubr.f32.gmra.mxu0 %v1120
  %v1188 = vpop.f32.mrf.mxu0
  %v1189 = vadd.f32 0.0, %v1188
  %v1190 = vpop.f32.mrf.mxu0
  %1191 = vdwg.mxu0
  %v1192 = vadd.f32 %v1113, %v1189
  %v1193 = vxor.u32 %v1192, 2147483648
  %v1194 = vmul.f32 %v1193, 1.442695
  %v1195 = vpow.pop %v1194
  %v1196 = vadd.f32 %v1195, 1.0
  %v1197 = vrcp.pop %v1196
  %v1198 = vmul.f32 1.0, %v1197
  %v1199 = vld [vmem:[%s4] sm:$0x1]
  %v1201 = vlaneseq
  %v1202 = vshrl.u32 %v1201, 7
  %v1203 = vsub.s32 0, %v1202
  %v1204 = vrot.slane %v1199, %v1203
  %1205 = vrot.lane.b32.xlu0 %v1204, 64
  %v1206 = vpop.permute.xlu0 %1205
  %v1208 = vadd.f32 %v1189, %v1206
  %1210 = vrot.lane.b32.xlu0 %v1208, 64
  %v1211 = vpop.permute.xlu0 %1210
  %v1213 = vmul.f32 %v1198, %v1211
  %1215 = vrot.lane.b32.xlu0 %v1213, 64
  %v1216 = vpop.permute.xlu0 %1215
  %v1218 = vadd.f32 %v1113, %v1216
  %v1219 = vtanh.pop %v1218
  %v1220 = vsub.f32 1.0, %v1198
  %1222 = vrot.lane.b32.xlu0 %v1219, 96
  %v1223 = vpop.permute.xlu0 %1222
  %v1225 = vmul.f32 %v1220, %v1223
  %v1226 = vmul.f32 %v1198, %v1025
  %v1227 = vadd.f32 %v1225, %v1226
  %1229 = vrot.lane.b32.xlu0 %v1227, 96
  %v1230 = vpop.permute.xlu0 %1229
  %s1232 = scalar_lea.vmem %s5, 20
  %1233 = vst.msk [vmem:[%s1232] sm:$0xf] %vm222, %v1230
  %s1234 = scalar_lea.vmem %s0, 24
  %v1235 = vld [vmem:[%s1234] sm:$0xf]
  %v1236 = vld [vmem:[%s1] sm:$0xff]
  %v1237 = vld [vmem:[%s1 + $0x8] sm:$0xff]
  %v1238 = vld [vmem:[%s3] sm:$0x1]
  %v1240 = vlaneseq
  %v1241 = vshrl.u32 %v1240, 7
  %v1242 = vsub.s32 0, %v1241
  %v1243 = vrot.slane %v1238, %v1242
  %v1246 = vsel %vm30, %v1235, 0
  %1248 = vmatprep.subr.mxu0 0.0
  %1249 = vmatpush1.msra.mxu0 0.0
  %1250 = vmatprep.subr.mxu0 0.0
  %1251 = vmatpush1.msra.mxu0 0.0
  %1252 = vmatprep.subr.mxu0 0.0
  %1253 = vmatpush1.msra.mxu0 0.0
  %1254 = vmatprep.subr.mxu0 0.0
  %1255 = vmatpush1.msra.mxu0 0.0
  %1256 = vmatprep.subr.mxu0 0.0
  %1257 = vmatpush1.msra.mxu0 0.0
  %1258 = vmatprep.subr.mxu0 0.0
  %1259 = vmatpush1.msra.mxu0 0.0
  %1260 = vmatprep.subr.mxu0 0.0
  %1261 = vmatpush1.msra.mxu0 0.0
  %1262 = vmatprep.subr.mxu0 0.0
  %1263 = vmatpush1.msra.mxu0 0.0
  %1264 = vmatprep.subr.mxu0 0.0
  %1265 = vmatpush1.msra.mxu0 0.0
  %1266 = vmatprep.subr.mxu0 0.0
  %1267 = vmatpush1.msra.mxu0 0.0
  %1268 = vmatprep.subr.mxu0 0.0
  %1269 = vmatpush1.msra.mxu0 0.0
  %1270 = vmatprep.subr.mxu0 0.0
  %1271 = vmatpush1.msra.mxu0 0.0
  %1272 = vmatprep.subr.mxu0 0.0
  %1273 = vmatpush1.msra.mxu0 0.0
  %1274 = vmatprep.subr.mxu0 0.0
  %1275 = vmatpush1.msra.mxu0 0.0
  %1276 = vmatprep.subr.mxu0 0.0
  %1277 = vmatpush1.msra.mxu0 %v1237
  %1278 = vmatprep.subr.mxu0 0.0
  %1279 = vmatpush1.msra.mxu0 %v1236
  %1280 = vmatprep.subr.mxu0 0.0
  %1281 = vmatpush2.msra.mxu0 0.0
  %1282 = vmatprep.subr.mxu0 0.0
  %1283 = vmatpush2.msra.mxu0 0.0
  %1284 = vmatprep.subr.mxu0 0.0
  %1285 = vmatpush2.msra.mxu0 0.0
  %1286 = vmatprep.subr.mxu0 0.0
  %1287 = vmatpush2.msra.mxu0 0.0
  %1288 = vmatprep.subr.mxu0 0.0
  %1289 = vmatpush2.msra.mxu0 0.0
  %1290 = vmatprep.subr.mxu0 0.0
  %1291 = vmatpush2.msra.mxu0 0.0
  %1292 = vmatprep.subr.mxu0 0.0
  %1293 = vmatpush2.msra.mxu0 0.0
  %1294 = vmatprep.subr.mxu0 0.0
  %1295 = vmatpush2.msra.mxu0 0.0
  %1296 = vmatprep.subr.mxu0 0.0
  %1297 = vmatpush2.msra.mxu0 0.0
  %1298 = vmatprep.subr.mxu0 0.0
  %1299 = vmatpush2.msra.mxu0 0.0
  %1300 = vmatprep.subr.mxu0 0.0
  %1301 = vmatpush2.msra.mxu0 0.0
  %1302 = vmatprep.subr.mxu0 0.0
  %1303 = vmatpush2.msra.mxu0 0.0
  %1304 = vmatprep.subr.mxu0 0.0
  %1305 = vmatpush2.msra.mxu0 0.0
  %1306 = vmatprep.subr.mxu0 0.0
  %1307 = vmatpush2.msra.mxu0 0.0
  %1308 = vmatprep.subr.mxu0 0.0
  %1309 = vmatpush2.msra.mxu0 0.0
  %1310 = vmatprep.subr.mxu0 0.0
  %1311 = vmatpush2.msra.mxu0 0.0
  %1312 = vmatprep.mubr.f32.mxu0 0.0
  %1313 = vmatmul.mubr.f32.gmra.mxu0 %v1246
  %v1314 = vpop.f32.mrf.mxu0
  %v1315 = vadd.f32 %v1243, %v1314
  %v1316 = vpop.f32.mrf.mxu0
  %1317 = vdwg.mxu0
  %v1318 = vld [vmem:[%s2] sm:$0xff]
  %v1319 = vld [vmem:[%s2 + $0x8] sm:$0xff]
  %v1320 = vld [vmem:[%s2 + $0x10] sm:$0xff]
  %v1321 = vld [vmem:[%s2 + $0x18] sm:$0xff]
  %v1322 = vsel %vm108, %v1230, 0
  %1324 = vmatprep.subr.mxu0 0.0
  %1325 = vmatpush1.msra.mxu0 0.0
  %1326 = vmatprep.subr.mxu0 0.0
  %1327 = vmatpush1.msra.mxu0 0.0
  %1328 = vmatprep.subr.mxu0 0.0
  %1329 = vmatpush1.msra.mxu0 0.0
  %1330 = vmatprep.subr.mxu0 0.0
  %1331 = vmatpush1.msra.mxu0 0.0
  %1332 = vmatprep.subr.mxu0 0.0
  %1333 = vmatpush1.msra.mxu0 0.0
  %1334 = vmatprep.subr.mxu0 0.0
  %1335 = vmatpush1.msra.mxu0 0.0
  %1336 = vmatprep.subr.mxu0 0.0
  %1337 = vmatpush1.msra.mxu0 0.0
  %1338 = vmatprep.subr.mxu0 0.0
  %1339 = vmatpush1.msra.mxu0 0.0
  %1340 = vmatprep.subr.mxu0 0.0
  %1341 = vmatpush1.msra.mxu0 0.0
  %1342 = vmatprep.subr.mxu0 0.0
  %1343 = vmatpush1.msra.mxu0 0.0
  %1344 = vmatprep.subr.mxu0 0.0
  %1345 = vmatpush1.msra.mxu0 0.0
  %1346 = vmatprep.subr.mxu0 0.0
  %1347 = vmatpush1.msra.mxu0 0.0
  %1348 = vmatprep.subr.mxu0 0.0
  %1349 = vmatpush1.msra.mxu0 %v1321
  %1350 = vmatprep.subr.mxu0 0.0
  %1351 = vmatpush1.msra.mxu0 %v1320
  %1352 = vmatprep.subr.mxu0 0.0
  %1353 = vmatpush1.msra.mxu0 %v1319
  %1354 = vmatprep.subr.mxu0 0.0
  %1355 = vmatpush1.msra.mxu0 %v1318
  %1356 = vmatprep.subr.mxu0 0.0
  %1357 = vmatpush2.msra.mxu0 0.0
  %1358 = vmatprep.subr.mxu0 0.0
  %1359 = vmatpush2.msra.mxu0 0.0
  %1360 = vmatprep.subr.mxu0 0.0
  %1361 = vmatpush2.msra.mxu0 0.0
  %1362 = vmatprep.subr.mxu0 0.0
  %1363 = vmatpush2.msra.mxu0 0.0
  %1364 = vmatprep.subr.mxu0 0.0
  %1365 = vmatpush2.msra.mxu0 0.0
  %1366 = vmatprep.subr.mxu0 0.0
  %1367 = vmatpush2.msra.mxu0 0.0
  %1368 = vmatprep.subr.mxu0 0.0
  %1369 = vmatpush2.msra.mxu0 0.0
  %1370 = vmatprep.subr.mxu0 0.0
  %1371 = vmatpush2.msra.mxu0 0.0
  %1372 = vmatprep.subr.mxu0 0.0
  %1373 = vmatpush2.msra.mxu0 0.0
  %1374 = vmatprep.subr.mxu0 0.0
  %1375 = vmatpush2.msra.mxu0 0.0
  %1376 = vmatprep.subr.mxu0 0.0
  %1377 = vmatpush2.msra.mxu0 0.0
  %1378 = vmatprep.subr.mxu0 0.0
  %1379 = vmatpush2.msra.mxu0 0.0
  %1380 = vmatprep.subr.mxu0 0.0
  %1381 = vmatpush2.msra.mxu0 0.0
  %1382 = vmatprep.subr.mxu0 0.0
  %1383 = vmatpush2.msra.mxu0 0.0
  %1384 = vmatprep.subr.mxu0 0.0
  %1385 = vmatpush2.msra.mxu0 0.0
  %1386 = vmatprep.subr.mxu0 0.0
  %1387 = vmatpush2.msra.mxu0 0.0
  %1388 = vmatprep.mubr.f32.mxu0 0.0
  %1389 = vmatmul.mubr.f32.gmra.mxu0 %v1322
  %v1390 = vpop.f32.mrf.mxu0
  %v1391 = vadd.f32 0.0, %v1390
  %v1392 = vpop.f32.mrf.mxu0
  %1393 = vdwg.mxu0
  %v1394 = vadd.f32 %v1315, %v1391
  %v1395 = vxor.u32 %v1394, 2147483648
  %v1396 = vmul.f32 %v1395, 1.442695
  %v1397 = vpow.pop %v1396
  %v1398 = vadd.f32 %v1397, 1.0
  %v1399 = vrcp.pop %v1398
  %v1400 = vmul.f32 1.0, %v1399
  %v1401 = vld [vmem:[%s4] sm:$0x1]
  %v1403 = vlaneseq
  %v1404 = vshrl.u32 %v1403, 7
  %v1405 = vsub.s32 0, %v1404
  %v1406 = vrot.slane %v1401, %v1405
  %1407 = vrot.lane.b32.xlu0 %v1406, 64
  %v1408 = vpop.permute.xlu0 %1407
  %v1410 = vadd.f32 %v1391, %v1408
  %1412 = vrot.lane.b32.xlu0 %v1410, 64
  %v1413 = vpop.permute.xlu0 %1412
  %v1415 = vmul.f32 %v1400, %v1413
  %1417 = vrot.lane.b32.xlu0 %v1415, 64
  %v1418 = vpop.permute.xlu0 %1417
  %v1420 = vadd.f32 %v1315, %v1418
  %v1421 = vtanh.pop %v1420
  %v1422 = vsub.f32 1.0, %v1400
  %1424 = vrot.lane.b32.xlu0 %v1421, 96
  %v1425 = vpop.permute.xlu0 %1424
  %v1427 = vmul.f32 %v1422, %v1425
  %v1428 = vmul.f32 %v1400, %v1227
  %v1429 = vadd.f32 %v1427, %v1428
  %1431 = vrot.lane.b32.xlu0 %v1429, 96
  %v1432 = vpop.permute.xlu0 %1431
  %s1434 = scalar_lea.vmem %s5, 24
  %1435 = vst.msk [vmem:[%s1434] sm:$0xf] %vm222, %v1432
  %s1436 = scalar_lea.vmem %s0, 28
  %v1437 = vld [vmem:[%s1436] sm:$0xf]
  %v1438 = vld [vmem:[%s1] sm:$0xff]
  %v1439 = vld [vmem:[%s1 + $0x8] sm:$0xff]
  %v1440 = vld [vmem:[%s3] sm:$0x1]
  %v1442 = vlaneseq
  %v1443 = vshrl.u32 %v1442, 7
  %v1444 = vsub.s32 0, %v1443
  %v1445 = vrot.slane %v1440, %v1444
  %v1448 = vsel %vm30, %v1437, 0
  %1450 = vmatprep.subr.mxu0 0.0
  %1451 = vmatpush1.msra.mxu0 0.0
  %1452 = vmatprep.subr.mxu0 0.0
  %1453 = vmatpush1.msra.mxu0 0.0
  %1454 = vmatprep.subr.mxu0 0.0
  %1455 = vmatpush1.msra.mxu0 0.0
  %1456 = vmatprep.subr.mxu0 0.0
  %1457 = vmatpush1.msra.mxu0 0.0
  %1458 = vmatprep.subr.mxu0 0.0
  %1459 = vmatpush1.msra.mxu0 0.0
  %1460 = vmatprep.subr.mxu0 0.0
  %1461 = vmatpush1.msra.mxu0 0.0
  %1462 = vmatprep.subr.mxu0 0.0
  %1463 = vmatpush1.msra.mxu0 0.0
  %1464 = vmatprep.subr.mxu0 0.0
  %1465 = vmatpush1.msra.mxu0 0.0
  %1466 = vmatprep.subr.mxu0 0.0
  %1467 = vmatpush1.msra.mxu0 0.0
  %1468 = vmatprep.subr.mxu0 0.0
  %1469 = vmatpush1.msra.mxu0 0.0
  %1470 = vmatprep.subr.mxu0 0.0
  %1471 = vmatpush1.msra.mxu0 0.0
  %1472 = vmatprep.subr.mxu0 0.0
  %1473 = vmatpush1.msra.mxu0 0.0
  %1474 = vmatprep.subr.mxu0 0.0
  %1475 = vmatpush1.msra.mxu0 0.0
  %1476 = vmatprep.subr.mxu0 0.0
  %1477 = vmatpush1.msra.mxu0 0.0
  %1478 = vmatprep.subr.mxu0 0.0
  %1479 = vmatpush1.msra.mxu0 %v1439
  %1480 = vmatprep.subr.mxu0 0.0
  %1481 = vmatpush1.msra.mxu0 %v1438
  %1482 = vmatprep.subr.mxu0 0.0
  %1483 = vmatpush2.msra.mxu0 0.0
  %1484 = vmatprep.subr.mxu0 0.0
  %1485 = vmatpush2.msra.mxu0 0.0
  %1486 = vmatprep.subr.mxu0 0.0
  %1487 = vmatpush2.msra.mxu0 0.0
  %1488 = vmatprep.subr.mxu0 0.0
  %1489 = vmatpush2.msra.mxu0 0.0
  %1490 = vmatprep.subr.mxu0 0.0
  %1491 = vmatpush2.msra.mxu0 0.0
  %1492 = vmatprep.subr.mxu0 0.0
  %1493 = vmatpush2.msra.mxu0 0.0
  %1494 = vmatprep.subr.mxu0 0.0
  %1495 = vmatpush2.msra.mxu0 0.0
  %1496 = vmatprep.subr.mxu0 0.0
  %1497 = vmatpush2.msra.mxu0 0.0
  %1498 = vmatprep.subr.mxu0 0.0
  %1499 = vmatpush2.msra.mxu0 0.0
  %1500 = vmatprep.subr.mxu0 0.0
  %1501 = vmatpush2.msra.mxu0 0.0
  %1502 = vmatprep.subr.mxu0 0.0
  %1503 = vmatpush2.msra.mxu0 0.0
  %1504 = vmatprep.subr.mxu0 0.0
  %1505 = vmatpush2.msra.mxu0 0.0
  %1506 = vmatprep.subr.mxu0 0.0
  %1507 = vmatpush2.msra.mxu0 0.0
  %1508 = vmatprep.subr.mxu0 0.0
  %1509 = vmatpush2.msra.mxu0 0.0
  %1510 = vmatprep.subr.mxu0 0.0
  %1511 = vmatpush2.msra.mxu0 0.0
  %1512 = vmatprep.subr.mxu0 0.0
  %1513 = vmatpush2.msra.mxu0 0.0
  %1514 = vmatprep.mubr.f32.mxu0 0.0
  %1515 = vmatmul.mubr.f32.gmra.mxu0 %v1448
  %v1516 = vpop.f32.mrf.mxu0
  %v1517 = vadd.f32 %v1445, %v1516
  %v1518 = vpop.f32.mrf.mxu0
  %1519 = vdwg.mxu0
  %v1520 = vld [vmem:[%s2] sm:$0xff]
  %v1521 = vld [vmem:[%s2 + $0x8] sm:$0xff]
  %v1522 = vld [vmem:[%s2 + $0x10] sm:$0xff]
  %v1523 = vld [vmem:[%s2 + $0x18] sm:$0xff]
  %v1524 = vsel %vm108, %v1432, 0
  %1526 = vmatprep.subr.mxu0 0.0
  %1527 = vmatpush1.msra.mxu0 0.0
  %1528 = vmatprep.subr.mxu0 0.0
  %1529 = vmatpush1.msra.mxu0 0.0
  %1530 = vmatprep.subr.mxu0 0.0
  %1531 = vmatpush1.msra.mxu0 0.0
  %1532 = vmatprep.subr.mxu0 0.0
  %1533 = vmatpush1.msra.mxu0 0.0
  %1534 = vmatprep.subr.mxu0 0.0
  %1535 = vmatpush1.msra.mxu0 0.0
  %1536 = vmatprep.subr.mxu0 0.0
  %1537 = vmatpush1.msra.mxu0 0.0
  %1538 = vmatprep.subr.mxu0 0.0
  %1539 = vmatpush1.msra.mxu0 0.0
  %1540 = vmatprep.subr.mxu0 0.0
  %1541 = vmatpush1.msra.mxu0 0.0
  %1542 = vmatprep.subr.mxu0 0.0
  %1543 = vmatpush1.msra.mxu0 0.0
  %1544 = vmatprep.subr.mxu0 0.0
  %1545 = vmatpush1.msra.mxu0 0.0
  %1546 = vmatprep.subr.mxu0 0.0
  %1547 = vmatpush1.msra.mxu0 0.0
  %1548 = vmatprep.subr.mxu0 0.0
  %1549 = vmatpush1.msra.mxu0 0.0
  %1550 = vmatprep.subr.mxu0 0.0
  %1551 = vmatpush1.msra.mxu0 %v1523
  %1552 = vmatprep.subr.mxu0 0.0
  %1553 = vmatpush1.msra.mxu0 %v1522
  %1554 = vmatprep.subr.mxu0 0.0
  %1555 = vmatpush1.msra.mxu0 %v1521
  %1556 = vmatprep.subr.mxu0 0.0
  %1557 = vmatpush1.msra.mxu0 %v1520
  %1558 = vmatprep.subr.mxu0 0.0
  %1559 = vmatpush2.msra.mxu0 0.0
  %1560 = vmatprep.subr.mxu0 0.0
  %1561 = vmatpush2.msra.mxu0 0.0
  %1562 = vmatprep.subr.mxu0 0.0
  %1563 = vmatpush2.msra.mxu0 0.0
  %1564 = vmatprep.subr.mxu0 0.0
  %1565 = vmatpush2.msra.mxu0 0.0
  %1566 = vmatprep.subr.mxu0 0.0
  %1567 = vmatpush2.msra.mxu0 0.0
  %1568 = vmatprep.subr.mxu0 0.0
  %1569 = vmatpush2.msra.mxu0 0.0
  %1570 = vmatprep.subr.mxu0 0.0
  %1571 = vmatpush2.msra.mxu0 0.0
  %1572 = vmatprep.subr.mxu0 0.0
  %1573 = vmatpush2.msra.mxu0 0.0
  %1574 = vmatprep.subr.mxu0 0.0
  %1575 = vmatpush2.msra.mxu0 0.0
  %1576 = vmatprep.subr.mxu0 0.0
  %1577 = vmatpush2.msra.mxu0 0.0
  %1578 = vmatprep.subr.mxu0 0.0
  %1579 = vmatpush2.msra.mxu0 0.0
  %1580 = vmatprep.subr.mxu0 0.0
  %1581 = vmatpush2.msra.mxu0 0.0
  %1582 = vmatprep.subr.mxu0 0.0
  %1583 = vmatpush2.msra.mxu0 0.0
  %1584 = vmatprep.subr.mxu0 0.0
  %1585 = vmatpush2.msra.mxu0 0.0
  %1586 = vmatprep.subr.mxu0 0.0
  %1587 = vmatpush2.msra.mxu0 0.0
  %1588 = vmatprep.subr.mxu0 0.0
  %1589 = vmatpush2.msra.mxu0 0.0
  %1590 = vmatprep.mubr.f32.mxu0 0.0
  %1591 = vmatmul.mubr.f32.gmra.mxu0 %v1524
  %v1592 = vpop.f32.mrf.mxu0
  %v1593 = vadd.f32 0.0, %v1592
  %v1594 = vpop.f32.mrf.mxu0
  %1595 = vdwg.mxu0
  %v1596 = vadd.f32 %v1517, %v1593
  %v1597 = vxor.u32 %v1596, 2147483648
  %v1598 = vmul.f32 %v1597, 1.442695
  %v1599 = vpow.pop %v1598
  %v1600 = vadd.f32 %v1599, 1.0
  %v1601 = vrcp.pop %v1600
  %v1602 = vmul.f32 1.0, %v1601
  %v1603 = vld [vmem:[%s4] sm:$0x1]
  %v1605 = vlaneseq
  %v1606 = vshrl.u32 %v1605, 7
  %v1607 = vsub.s32 0, %v1606
  %v1608 = vrot.slane %v1603, %v1607
  %1609 = vrot.lane.b32.xlu0 %v1608, 64
  %v1610 = vpop.permute.xlu0 %1609
  %v1612 = vadd.f32 %v1593, %v1610
  %1614 = vrot.lane.b32.xlu0 %v1612, 64
  %v1615 = vpop.permute.xlu0 %1614
  %v1617 = vmul.f32 %v1602, %v1615
  %1619 = vrot.lane.b32.xlu0 %v1617, 64
  %v1620 = vpop.permute.xlu0 %1619
  %v1622 = vadd.f32 %v1517, %v1620
  %v1623 = vtanh.pop %v1622
  %v1624 = vsub.f32 1.0, %v1602
  %1626 = vrot.lane.b32.xlu0 %v1623, 96
  %v1627 = vpop.permute.xlu0 %1626
  %v1629 = vmul.f32 %v1624, %v1627
  %v1630 = vmul.f32 %v1602, %v1429
  %v1631 = vadd.f32 %v1629, %v1630
  %1633 = vrot.lane.b32.xlu0 %v1631, 96
  %v1634 = vpop.permute.xlu0 %1633
  %s1636 = scalar_lea.vmem %s5, 28
  %1637 = vst.msk [vmem:[%s1636] sm:$0xf] %vm222, %v1634
  // Predicated region
  $region22: #{gru_forward.2} parent=0 // pred_check
    _
  $region23: #{gru_forward.2} parent=0 // pred_check_branch
    %1639 = sbr.rel (0) target = $region25
  $region24: #{gru_forward.2} parent=0 // pred_region
    _
  $region25: #{gru_forward.2} parent=0 // pred_fallthru
    _
  // Predicated region
  $region26: #{gru_forward.2} parent=0 // pred_check
    _
  $region27: #{gru_forward.2} parent=0 // pred_check_branch
    %1641 = sbr.rel (0) target = $region29
  $region28: #{gru_forward.2} parent=0 // pred_region
    _
  $region29: #{gru_forward.2} parent=0 // pred_fallthru
    _

</llo_original>
